<compile_context>
chip_gen: v7x
topology: tpu7x:2x2x1
jax: 0.10.0
libtpu: 0.0.40
codegen_flags: <defaults>
</compile_context>

<pallas_src>
import jax
import jax.numpy as jnp
from jax.experimental import pallas as pl
from jax.experimental.pallas import tpu as pltpu


_PAD = 128  # flat-lane pad on each side of the spatial axis (>= W+1, keeps interior 128-aligned)


# ----------------------------- fused layer kernel -----------------------------

def _make_layer_kernel(N, C, W, X, pad):
    """Whole-layer kernel; grid axis 0 iterates blocks. Activations are (N, C, X=H*W)."""

    def kernel(x_ref, w1_ref, g1_ref, w2_ref, g2_ref, out_ref,
               xin_ref, xpad_ref, col_ref):
        b = pl.program_id(0)

        @pl.when(b == 0)
        def _init():
            # Carry <- layer input; zero only the pad regions of the conv scratch
            # (the interior is overwritten by every stage, pads are never written again).
            xin_ref[...] = x_ref[...]
            xpad_ref[:, :, 0:pad] = jnp.zeros((N, C, pad), jnp.float32)
            xpad_ref[:, :, pad + X:pad + X + pad] = jnp.zeros((N, C, pad), jnp.float32)

        # W-boundary masks (hoisted, shared by both stages).
        w_idx = jax.lax.broadcasted_iota(jnp.int32, (1, X), 1) % W
        wm_l = jnp.where(w_idx >= 1, 1.0, 0.0).astype(jnp.float32)      # tap reads col w-1
        wm_r = jnp.where(w_idx <= W - 2, 1.0, 0.0).astype(jnp.float32)  # tap reads col w+1

        inv_cnt = 1.0 / float(N * X)

        def bcos_conv_bn(w2d, gamma):
            # im2col: one masked shifted copy per (tap, n). Stage input occupies
            # xpad_ref[:, :, pad:pad+X]; H-boundary zero padding comes from the pads,
            # W-boundary wrap is killed by wm_l / wm_r.
            for t in range(9):
                oh, ow = divmod(t, 3)
                oh -= 1
                ow -= 1
                start = pad + oh * W + ow
                for n in range(N):
                    xs = xpad_ref[n, :, start:start + X]                 # (C, X)
                    if ow == -1:
                        xs = xs * wm_l
                    elif ow == 1:
                        xs = xs * wm_r
                    col_ref[t * C:(t + 1) * C, n * X:(n + 1) * X] = xs

            col = col_ref[...]                                           # (9C, N*X)
            # One MXU matmul per stage: (C, 9C) @ (9C, N*X).
            acc = jnp.dot(w2d, col, preferred_element_type=jnp.float32)  # (C, N*X)
            # 3x3 patch squared norm straight from the masked im2col (one sublane reduce).
            nss = jnp.sum(col * col, axis=0, keepdims=True)              # (1, N*X)
            rns = jax.lax.rsqrt(nss + 1e-6)                              # 1 / patch_norm
            o = jnp.abs(acc) * rns * acc                                 # b==2 B-cos scaling
            # Uncentered BatchNorm (training-mode batch stats, no bias), one-pass variance.
            mu = jnp.sum(o, axis=1, keepdims=True) * inv_cnt             # (C, 1)
            ex2 = jnp.sum(o * o, axis=1, keepdims=True) * inv_cnt
            var = ex2 - mu * mu
            return o * (jax.lax.rsqrt(var + 1e-5) * gamma)               # (C, N*X)

        # Stage 1: conv1 + bn1 on the carried activation.
        for n in range(N):
            xpad_ref[n, :, pad:pad + X] = xin_ref[n]
        y1 = bcos_conv_bn(w1_ref[...], g1_ref[...])

        # Stage 2: conv2 + bn2, intermediate kept on-chip.
        for n in range(N):
            xpad_ref[n, :, pad:pad + X] = y1[:, n * X:(n + 1) * X]
        y2 = bcos_conv_bn(w2_ref[...], g2_ref[...])

        # Residual add with this block's input; write the output slab and update the carry.
        for n in range(N):
            res = y2[:, n * X:(n + 1) * X] + xin_ref[n]
            out_ref[n] = res
            xin_ref[n] = res

    return kernel


# ----------------------------- host-side wrappers -----------------------------

def _prep_weight(w_oihw):
    """F.normalize(weight, dim=(1,2,3)) and pack as (Cout, 9*Cin), row = tap*Cin + cin."""
    w = w_oihw.astype(jnp.float32)
    nrm = jnp.sqrt(jnp.sum(w * w, axis=(1, 2, 3), keepdims=True))
    wn = w / jnp.maximum(nrm, 1e-12)
    O, I = w.shape[0], w.shape[1]
    return jnp.transpose(wn, (0, 2, 3, 1)).reshape(O, 9 * I)


def bcos_layer(x_nchw, block_params):
    """Fused LayerWithIntermediateOutputs forward. Returns one output per block."""
    N, C, H, W = x_nchw.shape
    X = H * W
    nb = len(block_params)
    assert X % 128 == 0, "flat spatial dim must be lane-aligned (multiple of 128)"
    assert W + 1 <= _PAD
    xpad_len = X + 2 * _PAD

    x3 = x_nchw.reshape(N, C, X).astype(jnp.float32)        # free reshape, no transpose
    w1_all = jnp.stack([_prep_weight(p[0]) for p in block_params])                    # (nb, C, 9C)
    g1_all = jnp.stack([p[1].reshape(C, 1).astype(jnp.float32) for p in block_params])  # (nb, C, 1)
    w2_all = jnp.stack([_prep_weight(p[2]) for p in block_params])
    g2_all = jnp.stack([p[3].reshape(C, 1).astype(jnp.float32) for p in block_params])

    out = pl.pallas_call(
        _make_layer_kernel(N, C, W, X, _PAD),
        grid=(nb,),
        in_specs=[
            pl.BlockSpec((N, C, X), lambda b: (0, 0, 0)),          # layer input, resident
            pl.BlockSpec((None, C, 9 * C), lambda b: (b, 0, 0)),   # w1 for block b
            pl.BlockSpec((None, C, 1), lambda b: (b, 0, 0)),       # gamma1
            pl.BlockSpec((None, C, 9 * C), lambda b: (b, 0, 0)),   # w2
            pl.BlockSpec((None, C, 1), lambda b: (b, 0, 0)),       # gamma2
        ],
        out_specs=pl.BlockSpec((None, N, C, X), lambda b: (b, 0, 0, 0)),
        out_shape=jax.ShapeDtypeStruct((nb, N, C, X), jnp.float32),
        scratch_shapes=[
            pltpu.VMEM((N, C, X), jnp.float32),          # carried activation across blocks
            pltpu.VMEM((N, C, xpad_len), jnp.float32),   # zero-padded stage input
            pltpu.VMEM((9 * C, N * X), jnp.float32),     # im2col buffer
        ],
        compiler_params=pltpu.CompilerParams(dimension_semantics=("arbitrary",)),
    )(x3, w1_all, g1_all, w2_all, g2_all)

    return [out[i].reshape(N, C, H, W) for i in range(nb)]


@jax.jit
def layer_forward(x, block_params):
    """LayerWithIntermediateOutputs.forward: returns every block's output."""
    return bcos_layer(x, block_params)


# ----------------------------- pure-JAX reference -----------------------------

def _ref_bcos_conv(x, w):
    nrm = jnp.sqrt(jnp.sum(w * w, axis=(1, 2, 3), keepdims=True))
    wn = w / jnp.maximum(nrm, 1e-12)
    out = jax.lax.conv_general_dilated(
        x, wn, window_strides=(1, 1), padding=[(1, 1), (1, 1)],
        dimension_numbers=("NCHW", "OIHW", "NCHW"))
    sq = jnp.sum(x * x, axis=1, keepdims=True)
    ns = jax.lax.reduce_window(
        sq, 0.0, jax.lax.add, (1, 1, 3, 3), (1, 1, 1, 1),
        [(0, 0), (0, 0), (1, 1), (1, 1)])
    norms = jnp.sqrt(ns + 1e-6)
    return jnp.abs(out / norms) * out


def _ref_bn(x, g):
    var = jnp.var(x, axis=(0, 2, 3), keepdims=True)
    return x * jax.lax.rsqrt(var + 1e-5) * g.reshape(1, -1, 1, 1)


def _ref_block(x, w1, g1, w2, g2):
    o = _ref_bn(_ref_bcos_conv(x, w1), g1)
    return _ref_bn(_ref_bcos_conv(o, w2), g2) + x


def layer_reference(x, block_params):
    outputs = []
    for (w1, g1, w2, g2) in block_params:
        x = _ref_block(x, w1, g1, w2, g2)
        outputs.append(x)
    return outputs


# ----------------------------------- main -----------------------------------

if __name__ == "__main__":
    N, C, H, W = 2, 8, 16, 16      # inplanes = planes = 8, stride = 1
    n_blocks = 2
    key = jax.random.PRNGKey(0)
    keys = jax.random.split(key, 1 + 4 * n_blocks)

    x = jax.random.normal(keys[0], (N, C, H, W), dtype=jnp.float32)
    params = []
    for b in range(n_blocks):
        w1 = 0.1 * jax.random.normal(keys[1 + 4 * b], (C, C, 3, 3), dtype=jnp.float32)
        g1 = 1.0 + 0.1 * jax.random.normal(keys[2 + 4 * b], (C,), dtype=jnp.float32)
        w2 = 0.1 * jax.random.normal(keys[3 + 4 * b], (C, C, 3, 3), dtype=jnp.float32)
        g2 = 1.0 + 0.1 * jax.random.normal(keys[4 + 4 * b], (C,), dtype=jnp.float32)
        params.append((w1, g1, w2, g2))

    outs = jax.block_until_ready(layer_forward(x, params))
    refs = jax.block_until_ready(layer_reference(x, params))

    assert len(outs) == n_blocks
    for o, r in zip(outs, refs):
        assert o.shape == (N, C, H, W)
        assert jnp.allclose(o, r, rtol=2e-3, atol=2e-3), (
            float(jnp.max(jnp.abs(o - r))))

    print("KERNEL_OK")
</pallas_src>

<mosaic_0001>
module attributes {stable_mosaic.version = 11 : i64} {
  func.func @kernel(%arg0: i32, %arg1: memref<2x8x256xf32, #tpu.memory_space<vmem>>, %arg2: memref<1x8x72xf32, #tpu.memory_space<vmem>>, %arg3: memref<1x8x1xf32, #tpu.memory_space<vmem>>, %arg4: memref<1x8x72xf32, #tpu.memory_space<vmem>>, %arg5: memref<1x8x1xf32, #tpu.memory_space<vmem>>, %arg6: memref<1x2x8x256xf32, #tpu.memory_space<vmem>>, %arg7: memref<2x8x256xf32, #tpu.memory_space<vmem>>, %arg8: memref<2x8x512xf32, #tpu.memory_space<vmem>>, %arg9: memref<72x512xf32, #tpu.memory_space<vmem>>) attributes {dimension_semantics = [#tpu.dimension_semantics<arbitrary>], iteration_bounds = array<i64: 2>, scalar_prefetch = 0 : i64, scratch_operands = 3 : i64, tpu.core_type = #tpu.core_type<tc>, window_params = [{pipeline_mode = #tpu.pipeline_mode<synchronous>, transform_indices = @transform_0, window_bounds = array<i64: 2, 8, 256>}, {transform_indices = @transform_1, window_bounds = array<i64: 1, 8, 72>}, {transform_indices = @transform_2, window_bounds = array<i64: 1, 8, 1>}, {transform_indices = @transform_3, window_bounds = array<i64: 1, 8, 72>}, {transform_indices = @transform_4, window_bounds = array<i64: 1, 8, 1>}, {transform_indices = @transform_5, window_bounds = array<i64: 1, 2, 8, 256>}]} {
    %c0_i32 = arith.constant 0 : i32
    %0 = arith.cmpi eq, %arg0, %c0_i32 : i32
    %1 = arith.extui %0 : i1 to i32
    %c0_i32_0 = arith.constant 0 : i32
    %2 = arith.cmpi ne, %1, %c0_i32_0 : i32
    scf.if %2 {
      %c0_239 = arith.constant 0 : index
      %c0_240 = arith.constant 0 : index
      %c0_241 = arith.constant 0 : index
      %290 = vector.load %arg1[%c0_239, %c0_240, %c0_241] : memref<2x8x256xf32, #tpu.memory_space<vmem>>, vector<2x8x256xf32>
      %c0_242 = arith.constant 0 : index
      %c0_243 = arith.constant 0 : index
      %c0_244 = arith.constant 0 : index
      %291 = vector.load %arg7[%c0_242, %c0_243, %c0_244] : memref<2x8x256xf32, #tpu.memory_space<vmem>>, vector<2x8x256xf32>
      tpu.vector_store %arg7[%c0_242, %c0_243, %c0_244], %290 {strides = array<i32>} : memref<2x8x256xf32, #tpu.memory_space<vmem>>, vector<2x8x256xf32>,
      %cst_245 = arith.constant 0.000000e+00 : f32
      %292 = vector.broadcast %cst_245 : f32 to vector<2x8x128xf32>
      %c0_246 = arith.constant 0 : index
      %c0_247 = arith.constant 0 : index
      %c0_248 = arith.constant 0 : index
      %293 = vector.load %arg8[%c0_246, %c0_247, %c0_248] : memref<2x8x512xf32, #tpu.memory_space<vmem>>, vector<2x8x128xf32>
      tpu.vector_store %arg8[%c0_246, %c0_247, %c0_248], %292 {strides = array<i32>} : memref<2x8x512xf32, #tpu.memory_space<vmem>>, vector<2x8x128xf32>,
      %cst_249 = arith.constant 0.000000e+00 : f32
      %294 = vector.broadcast %cst_249 : f32 to vector<2x8x128xf32>
      %c0_250 = arith.constant 0 : index
      %c0_251 = arith.constant 0 : index
      %c384 = arith.constant 384 : index
      %295 = vector.load %arg8[%c0_250, %c0_251, %c384] : memref<2x8x512xf32, #tpu.memory_space<vmem>>, vector<2x8x128xf32>
      tpu.vector_store %arg8[%c0_250, %c0_251, %c384], %294 {strides = array<i32>} : memref<2x8x512xf32, #tpu.memory_space<vmem>>, vector<2x8x128xf32>,
    } else {
    }
    %3 = tpu.iota {dimensions = array<i32: 1>} : vector<1x256xi32>
    %c16_i32 = arith.constant 16 : i32
    %c0_i32_1 = arith.constant 0 : i32
    %4 = arith.cmpi eq, %c16_i32, %c0_i32_1 : i32
    %c1_i32 = arith.constant 1 : i32
    %5 = arith.select %4, %c1_i32, %c16_i32 : i32
    %6 = vector.broadcast %5 : i32 to vector<1x256xi32>
    %7 = arith.remsi %3, %6 : vector<1x256xi32>
    %c0_i32_2 = arith.constant 0 : i32
    %8 = vector.broadcast %c0_i32_2 : i32 to vector<1x256xi32>
    %9 = arith.cmpi ne, %7, %8 : vector<1x256xi32>
    %c0_i32_3 = arith.constant 0 : i32
    %10 = vector.broadcast %c0_i32_3 : i32 to vector<1x256xi32>
    %11 = arith.cmpi slt, %7, %10 : vector<1x256xi32>
    %c0_i32_4 = arith.constant 0 : i32
    %12 = arith.cmpi slt, %5, %c0_i32_4 : i32
    %13 = vector.broadcast %12 : i1 to vector<1x256xi1>
    %14 = vector.broadcast %13 : vector<1x256xi1> to vector<1x256xi1>
    %15 = arith.xori %11, %14 : vector<1x256xi1>
    %16 = arith.andi %15, %9 : vector<1x256xi1>
    %17 = vector.broadcast %5 : i32 to vector<1x256xi32>
    %18 = arith.addi %7, %17 : vector<1x256xi32>
    %19 = arith.select %16, %18, %7 : vector<1x256xi1>, vector<1x256xi32>
    %c1_i32_5 = arith.constant 1 : i32
    %20 = vector.broadcast %c1_i32_5 : i32 to vector<1x256xi32>
    %21 = arith.cmpi sge, %19, %20 : vector<1x256xi32>
    %cst = arith.constant 1.000000e+00 : f32
    %cst_6 = arith.constant 0.000000e+00 : f32
    %22 = vector.broadcast %cst : f32 to vector<1x256xf32>
    %23 = vector.broadcast %cst_6 : f32 to vector<1x256xf32>
    %24 = arith.select %21, %22, %23 : vector<1x256xi1>, vector<1x256xf32>
    %c14_i32 = arith.constant 14 : i32
    %25 = vector.broadcast %c14_i32 : i32 to vector<1x256xi32>
    %26 = arith.cmpi sle, %19, %25 : vector<1x256xi32>
    %cst_7 = arith.constant 1.000000e+00 : f32
    %cst_8 = arith.constant 0.000000e+00 : f32
    %27 = vector.broadcast %cst_7 : f32 to vector<1x256xf32>
    %28 = vector.broadcast %cst_8 : f32 to vector<1x256xf32>
    %29 = arith.select %26, %27, %28 : vector<1x256xi1>, vector<1x256xf32>
    %c0 = arith.constant 0 : index
    %c0_9 = arith.constant 0 : index
    %c0_10 = arith.constant 0 : index
    %30 = vector.load %arg7[%c0, %c0_9, %c0_10] : memref<2x8x256xf32, #tpu.memory_space<vmem>>, vector<1x8x256xf32>
    %31 = vector.shape_cast %30 : vector<1x8x256xf32> to vector<8x256xf32>
    %c0_11 = arith.constant 0 : index
    %c0_12 = arith.constant 0 : index
    %c128 = arith.constant 128 : index
    %32 = vector.load %arg8[%c0_11, %c0_12, %c128] : memref<2x8x512xf32, #tpu.memory_space<vmem>>, vector<1x8x256xf32>
    %33 = vector.shape_cast %32 : vector<1x8x256xf32> to vector<8x256xf32>
    %34 = vector.shape_cast %31 : vector<8x256xf32> to vector<1x8x256xf32>
    tpu.vector_store %arg8[%c0_11, %c0_12, %c128], %34 {strides = array<i32>} : memref<2x8x512xf32, #tpu.memory_space<vmem>>, vector<1x8x256xf32>,
    %c1 = arith.constant 1 : index
    %c0_13 = arith.constant 0 : index
    %c0_14 = arith.constant 0 : index
    %35 = vector.load %arg7[%c1, %c0_13, %c0_14] : memref<2x8x256xf32, #tpu.memory_space<vmem>>, vector<1x8x256xf32>
    %36 = vector.shape_cast %35 : vector<1x8x256xf32> to vector<8x256xf32>
    %c1_15 = arith.constant 1 : index
    %c0_16 = arith.constant 0 : index
    %c128_17 = arith.constant 128 : index
    %37 = vector.load %arg8[%c1_15, %c0_16, %c128_17] : memref<2x8x512xf32, #tpu.memory_space<vmem>>, vector<1x8x256xf32>
    %38 = vector.shape_cast %37 : vector<1x8x256xf32> to vector<8x256xf32>
    %39 = vector.shape_cast %36 : vector<8x256xf32> to vector<1x8x256xf32>
    tpu.vector_store %arg8[%c1_15, %c0_16, %c128_17], %39 {strides = array<i32>} : memref<2x8x512xf32, #tpu.memory_space<vmem>>, vector<1x8x256xf32>,
    %c0_18 = arith.constant 0 : index
    %c0_19 = arith.constant 0 : index
    %c0_20 = arith.constant 0 : index
    %40 = vector.load %arg2[%c0_18, %c0_19, %c0_20] : memref<1x8x72xf32, #tpu.memory_space<vmem>>, vector<1x8x72xf32>
    %41 = vector.shape_cast %40 : vector<1x8x72xf32> to vector<8x72xf32>
    %c0_21 = arith.constant 0 : index
    %c0_22 = arith.constant 0 : index
    %c0_23 = arith.constant 0 : index
    %42 = vector.load %arg3[%c0_21, %c0_22, %c0_23] : memref<1x8x1xf32, #tpu.memory_space<vmem>>, vector<1x8x1xf32>
    %43 = vector.shape_cast %42 : vector<1x8x1xf32> to vector<8x1xf32>
    %c0_24 = arith.constant 0 : index
    %c0_25 = arith.constant 0 : index
    %c111 = arith.constant 111 : index
    %44 = vector.load %arg8[%c0_24, %c0_25, %c111] : memref<2x8x512xf32, #tpu.memory_space<vmem>>, vector<1x8x256xf32>
    %45 = vector.shape_cast %44 : vector<1x8x256xf32> to vector<8x256xf32>
    %46 = vector.broadcast %24 : vector<1x256xf32> to vector<8x256xf32>
    %47 = arith.mulf %45, %46 : vector<8x256xf32>
    %c0_26 = arith.constant 0 : index
    %c0_27 = arith.constant 0 : index
    %48 = vector.load %arg9[%c0_26, %c0_27] : memref<72x512xf32, #tpu.memory_space<vmem>>, vector<8x256xf32>
    tpu.vector_store %arg9[%c0_26, %c0_27], %47 {strides = array<i32>} : memref<72x512xf32, #tpu.memory_space<vmem>>, vector<8x256xf32>,
    %c1_28 = arith.constant 1 : index
    %c0_29 = arith.constant 0 : index
    %c111_30 = arith.constant 111 : index
    %49 = vector.load %arg8[%c1_28, %c0_29, %c111_30] : memref<2x8x512xf32, #tpu.memory_space<vmem>>, vector<1x8x256xf32>
    %50 = vector.shape_cast %49 : vector<1x8x256xf32> to vector<8x256xf32>
    %51 = vector.broadcast %24 : vector<1x256xf32> to vector<8x256xf32>
    %52 = arith.mulf %50, %51 : vector<8x256xf32>
    %c0_31 = arith.constant 0 : index
    %c256 = arith.constant 256 : index
    %53 = vector.load %arg9[%c0_31, %c256] : memref<72x512xf32, #tpu.memory_space<vmem>>, vector<8x256xf32>
    tpu.vector_store %arg9[%c0_31, %c256], %52 {strides = array<i32>} : memref<72x512xf32, #tpu.memory_space<vmem>>, vector<8x256xf32>,
    %c0_32 = arith.constant 0 : index
    %c0_33 = arith.constant 0 : index
    %c112 = arith.constant 112 : index
    %54 = vector.load %arg8[%c0_32, %c0_33, %c112] : memref<2x8x512xf32, #tpu.memory_space<vmem>>, vector<1x8x256xf32>
    %55 = vector.shape_cast %54 : vector<1x8x256xf32> to vector<8x256xf32>
    %c8 = arith.constant 8 : index
    %c0_34 = arith.constant 0 : index
    %56 = vector.load %arg9[%c8, %c0_34] : memref<72x512xf32, #tpu.memory_space<vmem>>, vector<8x256xf32>
    tpu.vector_store %arg9[%c8, %c0_34], %55 {strides = array<i32>} : memref<72x512xf32, #tpu.memory_space<vmem>>, vector<8x256xf32>,
    %c1_35 = arith.constant 1 : index
    %c0_36 = arith.constant 0 : index
    %c112_37 = arith.constant 112 : index
    %57 = vector.load %arg8[%c1_35, %c0_36, %c112_37] : memref<2x8x512xf32, #tpu.memory_space<vmem>>, vector<1x8x256xf32>
    %58 = vector.shape_cast %57 : vector<1x8x256xf32> to vector<8x256xf32>
    %c8_38 = arith.constant 8 : index
    %c256_39 = arith.constant 256 : index
    %59 = vector.load %arg9[%c8_38, %c256_39] : memref<72x512xf32, #tpu.memory_space<vmem>>, vector<8x256xf32>
    tpu.vector_store %arg9[%c8_38, %c256_39], %58 {strides = array<i32>} : memref<72x512xf32, #tpu.memory_space<vmem>>, vector<8x256xf32>,
    %c0_40 = arith.constant 0 : index
    %c0_41 = arith.constant 0 : index
    %c113 = arith.constant 113 : index
    %60 = vector.load %arg8[%c0_40, %c0_41, %c113] : memref<2x8x512xf32, #tpu.memory_space<vmem>>, vector<1x8x256xf32>
    %61 = vector.shape_cast %60 : vector<1x8x256xf32> to vector<8x256xf32>
    %62 = vector.broadcast %29 : vector<1x256xf32> to vector<8x256xf32>
    %63 = arith.mulf %61, %62 : vector<8x256xf32>
    %c16 = arith.constant 16 : index
    %c0_42 = arith.constant 0 : index
    %64 = vector.load %arg9[%c16, %c0_42] : memref<72x512xf32, #tpu.memory_space<vmem>>, vector<8x256xf32>
    tpu.vector_store %arg9[%c16, %c0_42], %63 {strides = array<i32>} : memref<72x512xf32, #tpu.memory_space<vmem>>, vector<8x256xf32>,
    %c1_43 = arith.constant 1 : index
    %c0_44 = arith.constant 0 : index
    %c113_45 = arith.constant 113 : index
    %65 = vector.load %arg8[%c1_43, %c0_44, %c113_45] : memref<2x8x512xf32, #tpu.memory_space<vmem>>, vector<1x8x256xf32>
    %66 = vector.shape_cast %65 : vector<1x8x256xf32> to vector<8x256xf32>
    %67 = vector.broadcast %29 : vector<1x256xf32> to vector<8x256xf32>
    %68 = arith.mulf %66, %67 : vector<8x256xf32>
    %c16_46 = arith.constant 16 : index
    %c256_47 = arith.constant 256 : index
    %69 = vector.load %arg9[%c16_46, %c256_47] : memref<72x512xf32, #tpu.memory_space<vmem>>, vector<8x256xf32>
    tpu.vector_store %arg9[%c16_46, %c256_47], %68 {strides = array<i32>} : memref<72x512xf32, #tpu.memory_space<vmem>>, vector<8x256xf32>,
    %c0_48 = arith.constant 0 : index
    %c0_49 = arith.constant 0 : index
    %c127 = arith.constant 127 : index
    %70 = vector.load %arg8[%c0_48, %c0_49, %c127] : memref<2x8x512xf32, #tpu.memory_space<vmem>>, vector<1x8x256xf32>
    %71 = vector.shape_cast %70 : vector<1x8x256xf32> to vector<8x256xf32>
    %72 = vector.broadcast %24 : vector<1x256xf32> to vector<8x256xf32>
    %73 = arith.mulf %71, %72 : vector<8x256xf32>
    %c24 = arith.constant 24 : index
    %c0_50 = arith.constant 0 : index
    %74 = vector.load %arg9[%c24, %c0_50] : memref<72x512xf32, #tpu.memory_space<vmem>>, vector<8x256xf32>
    tpu.vector_store %arg9[%c24, %c0_50], %73 {strides = array<i32>} : memref<72x512xf32, #tpu.memory_space<vmem>>, vector<8x256xf32>,
    %c1_51 = arith.constant 1 : index
    %c0_52 = arith.constant 0 : index
    %c127_53 = arith.constant 127 : index
    %75 = vector.load %arg8[%c1_51, %c0_52, %c127_53] : memref<2x8x512xf32, #tpu.memory_space<vmem>>, vector<1x8x256xf32>
    %76 = vector.shape_cast %75 : vector<1x8x256xf32> to vector<8x256xf32>
    %77 = vector.broadcast %24 : vector<1x256xf32> to vector<8x256xf32>
    %78 = arith.mulf %76, %77 : vector<8x256xf32>
    %c24_54 = arith.constant 24 : index
    %c256_55 = arith.constant 256 : index
    %79 = vector.load %arg9[%c24_54, %c256_55] : memref<72x512xf32, #tpu.memory_space<vmem>>, vector<8x256xf32>
    tpu.vector_store %arg9[%c24_54, %c256_55], %78 {strides = array<i32>} : memref<72x512xf32, #tpu.memory_space<vmem>>, vector<8x256xf32>,
    %c0_56 = arith.constant 0 : index
    %c0_57 = arith.constant 0 : index
    %c128_58 = arith.constant 128 : index
    %80 = vector.load %arg8[%c0_56, %c0_57, %c128_58] : memref<2x8x512xf32, #tpu.memory_space<vmem>>, vector<1x8x256xf32>
    %81 = vector.shape_cast %80 : vector<1x8x256xf32> to vector<8x256xf32>
    %c32 = arith.constant 32 : index
    %c0_59 = arith.constant 0 : index
    %82 = vector.load %arg9[%c32, %c0_59] : memref<72x512xf32, #tpu.memory_space<vmem>>, vector<8x256xf32>
    tpu.vector_store %arg9[%c32, %c0_59], %81 {strides = array<i32>} : memref<72x512xf32, #tpu.memory_space<vmem>>, vector<8x256xf32>,
    %c1_60 = arith.constant 1 : index
    %c0_61 = arith.constant 0 : index
    %c128_62 = arith.constant 128 : index
    %83 = vector.load %arg8[%c1_60, %c0_61, %c128_62] : memref<2x8x512xf32, #tpu.memory_space<vmem>>, vector<1x8x256xf32>
    %84 = vector.shape_cast %83 : vector<1x8x256xf32> to vector<8x256xf32>
    %c32_63 = arith.constant 32 : index
    %c256_64 = arith.constant 256 : index
    %85 = vector.load %arg9[%c32_63, %c256_64] : memref<72x512xf32, #tpu.memory_space<vmem>>, vector<8x256xf32>
    tpu.vector_store %arg9[%c32_63, %c256_64], %84 {strides = array<i32>} : memref<72x512xf32, #tpu.memory_space<vmem>>, vector<8x256xf32>,
    %c0_65 = arith.constant 0 : index
    %c0_66 = arith.constant 0 : index
    %c129 = arith.constant 129 : index
    %86 = vector.load %arg8[%c0_65, %c0_66, %c129] : memref<2x8x512xf32, #tpu.memory_space<vmem>>, vector<1x8x256xf32>
    %87 = vector.shape_cast %86 : vector<1x8x256xf32> to vector<8x256xf32>
    %88 = vector.broadcast %29 : vector<1x256xf32> to vector<8x256xf32>
    %89 = arith.mulf %87, %88 : vector<8x256xf32>
    %c40 = arith.constant 40 : index
    %c0_67 = arith.constant 0 : index
    %90 = vector.load %arg9[%c40, %c0_67] : memref<72x512xf32, #tpu.memory_space<vmem>>, vector<8x256xf32>
    tpu.vector_store %arg9[%c40, %c0_67], %89 {strides = array<i32>} : memref<72x512xf32, #tpu.memory_space<vmem>>, vector<8x256xf32>,
    %c1_68 = arith.constant 1 : index
    %c0_69 = arith.constant 0 : index
    %c129_70 = arith.constant 129 : index
    %91 = vector.load %arg8[%c1_68, %c0_69, %c129_70] : memref<2x8x512xf32, #tpu.memory_space<vmem>>, vector<1x8x256xf32>
    %92 = vector.shape_cast %91 : vector<1x8x256xf32> to vector<8x256xf32>
    %93 = vector.broadcast %29 : vector<1x256xf32> to vector<8x256xf32>
    %94 = arith.mulf %92, %93 : vector<8x256xf32>
    %c40_71 = arith.constant 40 : index
    %c256_72 = arith.constant 256 : index
    %95 = vector.load %arg9[%c40_71, %c256_72] : memref<72x512xf32, #tpu.memory_space<vmem>>, vector<8x256xf32>
    tpu.vector_store %arg9[%c40_71, %c256_72], %94 {strides = array<i32>} : memref<72x512xf32, #tpu.memory_space<vmem>>, vector<8x256xf32>,
    %c0_73 = arith.constant 0 : index
    %c0_74 = arith.constant 0 : index
    %c143 = arith.constant 143 : index
    %96 = vector.load %arg8[%c0_73, %c0_74, %c143] : memref<2x8x512xf32, #tpu.memory_space<vmem>>, vector<1x8x256xf32>
    %97 = vector.shape_cast %96 : vector<1x8x256xf32> to vector<8x256xf32>
    %98 = vector.broadcast %24 : vector<1x256xf32> to vector<8x256xf32>
    %99 = arith.mulf %97, %98 : vector<8x256xf32>
    %c48 = arith.constant 48 : index
    %c0_75 = arith.constant 0 : index
    %100 = vector.load %arg9[%c48, %c0_75] : memref<72x512xf32, #tpu.memory_space<vmem>>, vector<8x256xf32>
    tpu.vector_store %arg9[%c48, %c0_75], %99 {strides = array<i32>} : memref<72x512xf32, #tpu.memory_space<vmem>>, vector<8x256xf32>,
    %c1_76 = arith.constant 1 : index
    %c0_77 = arith.constant 0 : index
    %c143_78 = arith.constant 143 : index
    %101 = vector.load %arg8[%c1_76, %c0_77, %c143_78] : memref<2x8x512xf32, #tpu.memory_space<vmem>>, vector<1x8x256xf32>
    %102 = vector.shape_cast %101 : vector<1x8x256xf32> to vector<8x256xf32>
    %103 = vector.broadcast %24 : vector<1x256xf32> to vector<8x256xf32>
    %104 = arith.mulf %102, %103 : vector<8x256xf32>
    %c48_79 = arith.constant 48 : index
    %c256_80 = arith.constant 256 : index
    %105 = vector.load %arg9[%c48_79, %c256_80] : memref<72x512xf32, #tpu.memory_space<vmem>>, vector<8x256xf32>
    tpu.vector_store %arg9[%c48_79, %c256_80], %104 {strides = array<i32>} : memref<72x512xf32, #tpu.memory_space<vmem>>, vector<8x256xf32>,
    %c0_81 = arith.constant 0 : index
    %c0_82 = arith.constant 0 : index
    %c144 = arith.constant 144 : index
    %106 = vector.load %arg8[%c0_81, %c0_82, %c144] : memref<2x8x512xf32, #tpu.memory_space<vmem>>, vector<1x8x256xf32>
    %107 = vector.shape_cast %106 : vector<1x8x256xf32> to vector<8x256xf32>
    %c56 = arith.constant 56 : index
    %c0_83 = arith.constant 0 : index
    %108 = vector.load %arg9[%c56, %c0_83] : memref<72x512xf32, #tpu.memory_space<vmem>>, vector<8x256xf32>
    tpu.vector_store %arg9[%c56, %c0_83], %107 {strides = array<i32>} : memref<72x512xf32, #tpu.memory_space<vmem>>, vector<8x256xf32>,
    %c1_84 = arith.constant 1 : index
    %c0_85 = arith.constant 0 : index
    %c144_86 = arith.constant 144 : index
    %109 = vector.load %arg8[%c1_84, %c0_85, %c144_86] : memref<2x8x512xf32, #tpu.memory_space<vmem>>, vector<1x8x256xf32>
    %110 = vector.shape_cast %109 : vector<1x8x256xf32> to vector<8x256xf32>
    %c56_87 = arith.constant 56 : index
    %c256_88 = arith.constant 256 : index
    %111 = vector.load %arg9[%c56_87, %c256_88] : memref<72x512xf32, #tpu.memory_space<vmem>>, vector<8x256xf32>
    tpu.vector_store %arg9[%c56_87, %c256_88], %110 {strides = array<i32>} : memref<72x512xf32, #tpu.memory_space<vmem>>, vector<8x256xf32>,
    %c0_89 = arith.constant 0 : index
    %c0_90 = arith.constant 0 : index
    %c145 = arith.constant 145 : index
    %112 = vector.load %arg8[%c0_89, %c0_90, %c145] : memref<2x8x512xf32, #tpu.memory_space<vmem>>, vector<1x8x256xf32>
    %113 = vector.shape_cast %112 : vector<1x8x256xf32> to vector<8x256xf32>
    %114 = vector.broadcast %29 : vector<1x256xf32> to vector<8x256xf32>
    %115 = arith.mulf %113, %114 : vector<8x256xf32>
    %c64 = arith.constant 64 : index
    %c0_91 = arith.constant 0 : index
    %116 = vector.load %arg9[%c64, %c0_91] : memref<72x512xf32, #tpu.memory_space<vmem>>, vector<8x256xf32>
    tpu.vector_store %arg9[%c64, %c0_91], %115 {strides = array<i32>} : memref<72x512xf32, #tpu.memory_space<vmem>>, vector<8x256xf32>,
    %c1_92 = arith.constant 1 : index
    %c0_93 = arith.constant 0 : index
    %c145_94 = arith.constant 145 : index
    %117 = vector.load %arg8[%c1_92, %c0_93, %c145_94] : memref<2x8x512xf32, #tpu.memory_space<vmem>>, vector<1x8x256xf32>
    %118 = vector.shape_cast %117 : vector<1x8x256xf32> to vector<8x256xf32>
    %119 = vector.broadcast %29 : vector<1x256xf32> to vector<8x256xf32>
    %120 = arith.mulf %118, %119 : vector<8x256xf32>
    %c64_95 = arith.constant 64 : index
    %c256_96 = arith.constant 256 : index
    %121 = vector.load %arg9[%c64_95, %c256_96] : memref<72x512xf32, #tpu.memory_space<vmem>>, vector<8x256xf32>
    tpu.vector_store %arg9[%c64_95, %c256_96], %120 {strides = array<i32>} : memref<72x512xf32, #tpu.memory_space<vmem>>, vector<8x256xf32>,
    %c0_97 = arith.constant 0 : index
    %c0_98 = arith.constant 0 : index
    %122 = vector.load %arg9[%c0_97, %c0_98] : memref<72x512xf32, #tpu.memory_space<vmem>>, vector<72x512xf32>
    %cst_99 = arith.constant dense<0.000000e+00> : vector<8x512xf32>
    %123 = tpu.matmul %41, %122, %cst_99 {dimension_numbers = #tpu.dot_dimension_numbers<[1], [0], [0], [1], [0, 0, 1, 1], [], []>} : vector<8x72xf32>, vector<72x512xf32>, vector<8x512xf32> -> vector<8x512xf32>
    %124 = arith.mulf %122, %122 : vector<72x512xf32>
    %cst_100 = arith.constant dense<0.000000e+00> : vector<512xf32>
    %125 = vector.multi_reduction <add>, %124, %cst_100 [0] : vector<72x512xf32> to vector<512xf32>
    %126 = vector.shape_cast %125 : vector<512xf32> to vector<1x512xf32>
    %cst_101 = arith.constant 9.99999997E-7 : f32
    %127 = vector.broadcast %cst_101 : f32 to vector<1x512xf32>
    %128 = arith.addf %126, %127 : vector<1x512xf32>
    %129 = math.rsqrt %128 : vector<1x512xf32>
    %130 = math.absf %123 : vector<8x512xf32>
    %131 = vector.broadcast %129 : vector<1x512xf32> to vector<8x512xf32>
    %132 = arith.mulf %130, %131 : vector<8x512xf32>
    %133 = arith.mulf %132, %123 : vector<8x512xf32>
    %cst_102 = arith.constant dense<0.000000e+00> : vector<8xf32>
    %134 = vector.multi_reduction <add>, %133, %cst_102 [1] : vector<8x512xf32> to vector<8xf32>
    %135 = vector.shape_cast %134 : vector<8xf32> to vector<8x1xf32>
    %cst_103 = arith.constant 0.001953125 : f32
    %136 = vector.broadcast %cst_103 : f32 to vector<8x1xf32>
    %137 = arith.mulf %135, %136 : vector<8x1xf32>
    %138 = arith.mulf %133, %133 : vector<8x512xf32>
    %cst_104 = arith.constant dense<0.000000e+00> : vector<8xf32>
    %139 = vector.multi_reduction <add>, %138, %cst_104 [1] : vector<8x512xf32> to vector<8xf32>
    %140 = vector.shape_cast %139 : vector<8xf32> to vector<8x1xf32>
    %cst_105 = arith.constant 0.001953125 : f32
    %141 = vector.broadcast %cst_105 : f32 to vector<8x1xf32>
    %142 = arith.mulf %140, %141 : vector<8x1xf32>
    %143 = arith.mulf %137, %137 : vector<8x1xf32>
    %144 = arith.subf %142, %143 : vector<8x1xf32>
    %cst_106 = arith.constant 9.99999974E-6 : f32
    %145 = vector.broadcast %cst_106 : f32 to vector<8x1xf32>
    %146 = arith.addf %144, %145 : vector<8x1xf32>
    %147 = math.rsqrt %146 : vector<8x1xf32>
    %148 = arith.mulf %147, %43 : vector<8x1xf32>
    %149 = vector.broadcast %148 : vector<8x1xf32> to vector<8x512xf32>
    %150 = arith.mulf %133, %149 : vector<8x512xf32>
    %151 = vector.extract_strided_slice %150 {offsets = [0, 0], sizes = [8, 256], strides = [1, 1]} : vector<8x512xf32> to vector<8x256xf32>
    %c0_107 = arith.constant 0 : index
    %c0_108 = arith.constant 0 : index
    %c128_109 = arith.constant 128 : index
    %152 = vector.load %arg8[%c0_107, %c0_108, %c128_109] : memref<2x8x512xf32, #tpu.memory_space<vmem>>, vector<1x8x256xf32>
    %153 = vector.shape_cast %152 : vector<1x8x256xf32> to vector<8x256xf32>
    %154 = vector.shape_cast %151 : vector<8x256xf32> to vector<1x8x256xf32>
    tpu.vector_store %arg8[%c0_107, %c0_108, %c128_109], %154 {strides = array<i32>} : memref<2x8x512xf32, #tpu.memory_space<vmem>>, vector<1x8x256xf32>,
    %155 = vector.extract_strided_slice %150 {offsets = [0, 256], sizes = [8, 256], strides = [1, 1]} : vector<8x512xf32> to vector<8x256xf32>
    %c1_110 = arith.constant 1 : index
    %c0_111 = arith.constant 0 : index
    %c128_112 = arith.constant 128 : index
    %156 = vector.load %arg8[%c1_110, %c0_111, %c128_112] : memref<2x8x512xf32, #tpu.memory_space<vmem>>, vector<1x8x256xf32>
    %157 = vector.shape_cast %156 : vector<1x8x256xf32> to vector<8x256xf32>
    %158 = vector.shape_cast %155 : vector<8x256xf32> to vector<1x8x256xf32>
    tpu.vector_store %arg8[%c1_110, %c0_111, %c128_112], %158 {strides = array<i32>} : memref<2x8x512xf32, #tpu.memory_space<vmem>>, vector<1x8x256xf32>,
    %c0_113 = arith.constant 0 : index
    %c0_114 = arith.constant 0 : index
    %c0_115 = arith.constant 0 : index
    %159 = vector.load %arg4[%c0_113, %c0_114, %c0_115] : memref<1x8x72xf32, #tpu.memory_space<vmem>>, vector<1x8x72xf32>
    %160 = vector.shape_cast %159 : vector<1x8x72xf32> to vector<8x72xf32>
    %c0_116 = arith.constant 0 : index
    %c0_117 = arith.constant 0 : index
    %c0_118 = arith.constant 0 : index
    %161 = vector.load %arg5[%c0_116, %c0_117, %c0_118] : memref<1x8x1xf32, #tpu.memory_space<vmem>>, vector<1x8x1xf32>
    %162 = vector.shape_cast %161 : vector<1x8x1xf32> to vector<8x1xf32>
    %c0_119 = arith.constant 0 : index
    %c0_120 = arith.constant 0 : index
    %c111_121 = arith.constant 111 : index
    %163 = vector.load %arg8[%c0_119, %c0_120, %c111_121] : memref<2x8x512xf32, #tpu.memory_space<vmem>>, vector<1x8x256xf32>
    %164 = vector.shape_cast %163 : vector<1x8x256xf32> to vector<8x256xf32>
    %165 = vector.broadcast %24 : vector<1x256xf32> to vector<8x256xf32>
    %166 = arith.mulf %164, %165 : vector<8x256xf32>
    %c0_122 = arith.constant 0 : index
    %c0_123 = arith.constant 0 : index
    %167 = vector.load %arg9[%c0_122, %c0_123] : memref<72x512xf32, #tpu.memory_space<vmem>>, vector<8x256xf32>
    tpu.vector_store %arg9[%c0_122, %c0_123], %166 {strides = array<i32>} : memref<72x512xf32, #tpu.memory_space<vmem>>, vector<8x256xf32>,
    %c1_124 = arith.constant 1 : index
    %c0_125 = arith.constant 0 : index
    %c111_126 = arith.constant 111 : index
    %168 = vector.load %arg8[%c1_124, %c0_125, %c111_126] : memref<2x8x512xf32, #tpu.memory_space<vmem>>, vector<1x8x256xf32>
    %169 = vector.shape_cast %168 : vector<1x8x256xf32> to vector<8x256xf32>
    %170 = vector.broadcast %24 : vector<1x256xf32> to vector<8x256xf32>
    %171 = arith.mulf %169, %170 : vector<8x256xf32>
    %c0_127 = arith.constant 0 : index
    %c256_128 = arith.constant 256 : index
    %172 = vector.load %arg9[%c0_127, %c256_128] : memref<72x512xf32, #tpu.memory_space<vmem>>, vector<8x256xf32>
    tpu.vector_store %arg9[%c0_127, %c256_128], %171 {strides = array<i32>} : memref<72x512xf32, #tpu.memory_space<vmem>>, vector<8x256xf32>,
    %c0_129 = arith.constant 0 : index
    %c0_130 = arith.constant 0 : index
    %c112_131 = arith.constant 112 : index
    %173 = vector.load %arg8[%c0_129, %c0_130, %c112_131] : memref<2x8x512xf32, #tpu.memory_space<vmem>>, vector<1x8x256xf32>
    %174 = vector.shape_cast %173 : vector<1x8x256xf32> to vector<8x256xf32>
    %c8_132 = arith.constant 8 : index
    %c0_133 = arith.constant 0 : index
    %175 = vector.load %arg9[%c8_132, %c0_133] : memref<72x512xf32, #tpu.memory_space<vmem>>, vector<8x256xf32>
    tpu.vector_store %arg9[%c8_132, %c0_133], %174 {strides = array<i32>} : memref<72x512xf32, #tpu.memory_space<vmem>>, vector<8x256xf32>,
    %c1_134 = arith.constant 1 : index
    %c0_135 = arith.constant 0 : index
    %c112_136 = arith.constant 112 : index
    %176 = vector.load %arg8[%c1_134, %c0_135, %c112_136] : memref<2x8x512xf32, #tpu.memory_space<vmem>>, vector<1x8x256xf32>
    %177 = vector.shape_cast %176 : vector<1x8x256xf32> to vector<8x256xf32>
    %c8_137 = arith.constant 8 : index
    %c256_138 = arith.constant 256 : index
    %178 = vector.load %arg9[%c8_137, %c256_138] : memref<72x512xf32, #tpu.memory_space<vmem>>, vector<8x256xf32>
    tpu.vector_store %arg9[%c8_137, %c256_138], %177 {strides = array<i32>} : memref<72x512xf32, #tpu.memory_space<vmem>>, vector<8x256xf32>,
    %c0_139 = arith.constant 0 : index
    %c0_140 = arith.constant 0 : index
    %c113_141 = arith.constant 113 : index
    %179 = vector.load %arg8[%c0_139, %c0_140, %c113_141] : memref<2x8x512xf32, #tpu.memory_space<vmem>>, vector<1x8x256xf32>
    %180 = vector.shape_cast %179 : vector<1x8x256xf32> to vector<8x256xf32>
    %181 = vector.broadcast %29 : vector<1x256xf32> to vector<8x256xf32>
    %182 = arith.mulf %180, %181 : vector<8x256xf32>
    %c16_142 = arith.constant 16 : index
    %c0_143 = arith.constant 0 : index
    %183 = vector.load %arg9[%c16_142, %c0_143] : memref<72x512xf32, #tpu.memory_space<vmem>>, vector<8x256xf32>
    tpu.vector_store %arg9[%c16_142, %c0_143], %182 {strides = array<i32>} : memref<72x512xf32, #tpu.memory_space<vmem>>, vector<8x256xf32>,
    %c1_144 = arith.constant 1 : index
    %c0_145 = arith.constant 0 : index
    %c113_146 = arith.constant 113 : index
    %184 = vector.load %arg8[%c1_144, %c0_145, %c113_146] : memref<2x8x512xf32, #tpu.memory_space<vmem>>, vector<1x8x256xf32>
    %185 = vector.shape_cast %184 : vector<1x8x256xf32> to vector<8x256xf32>
    %186 = vector.broadcast %29 : vector<1x256xf32> to vector<8x256xf32>
    %187 = arith.mulf %185, %186 : vector<8x256xf32>
    %c16_147 = arith.constant 16 : index
    %c256_148 = arith.constant 256 : index
    %188 = vector.load %arg9[%c16_147, %c256_148] : memref<72x512xf32, #tpu.memory_space<vmem>>, vector<8x256xf32>
    tpu.vector_store %arg9[%c16_147, %c256_148], %187 {strides = array<i32>} : memref<72x512xf32, #tpu.memory_space<vmem>>, vector<8x256xf32>,
    %c0_149 = arith.constant 0 : index
    %c0_150 = arith.constant 0 : index
    %c127_151 = arith.constant 127 : index
    %189 = vector.load %arg8[%c0_149, %c0_150, %c127_151] : memref<2x8x512xf32, #tpu.memory_space<vmem>>, vector<1x8x256xf32>
    %190 = vector.shape_cast %189 : vector<1x8x256xf32> to vector<8x256xf32>
    %191 = vector.broadcast %24 : vector<1x256xf32> to vector<8x256xf32>
    %192 = arith.mulf %190, %191 : vector<8x256xf32>
    %c24_152 = arith.constant 24 : index
    %c0_153 = arith.constant 0 : index
    %193 = vector.load %arg9[%c24_152, %c0_153] : memref<72x512xf32, #tpu.memory_space<vmem>>, vector<8x256xf32>
    tpu.vector_store %arg9[%c24_152, %c0_153], %192 {strides = array<i32>} : memref<72x512xf32, #tpu.memory_space<vmem>>, vector<8x256xf32>,
    %c1_154 = arith.constant 1 : index
    %c0_155 = arith.constant 0 : index
    %c127_156 = arith.constant 127 : index
    %194 = vector.load %arg8[%c1_154, %c0_155, %c127_156] : memref<2x8x512xf32, #tpu.memory_space<vmem>>, vector<1x8x256xf32>
    %195 = vector.shape_cast %194 : vector<1x8x256xf32> to vector<8x256xf32>
    %196 = vector.broadcast %24 : vector<1x256xf32> to vector<8x256xf32>
    %197 = arith.mulf %195, %196 : vector<8x256xf32>
    %c24_157 = arith.constant 24 : index
    %c256_158 = arith.constant 256 : index
    %198 = vector.load %arg9[%c24_157, %c256_158] : memref<72x512xf32, #tpu.memory_space<vmem>>, vector<8x256xf32>
    tpu.vector_store %arg9[%c24_157, %c256_158], %197 {strides = array<i32>} : memref<72x512xf32, #tpu.memory_space<vmem>>, vector<8x256xf32>,
    %c0_159 = arith.constant 0 : index
    %c0_160 = arith.constant 0 : index
    %c128_161 = arith.constant 128 : index
    %199 = vector.load %arg8[%c0_159, %c0_160, %c128_161] : memref<2x8x512xf32, #tpu.memory_space<vmem>>, vector<1x8x256xf32>
    %200 = vector.shape_cast %199 : vector<1x8x256xf32> to vector<8x256xf32>
    %c32_162 = arith.constant 32 : index
    %c0_163 = arith.constant 0 : index
    %201 = vector.load %arg9[%c32_162, %c0_163] : memref<72x512xf32, #tpu.memory_space<vmem>>, vector<8x256xf32>
    tpu.vector_store %arg9[%c32_162, %c0_163], %200 {strides = array<i32>} : memref<72x512xf32, #tpu.memory_space<vmem>>, vector<8x256xf32>,
    %c1_164 = arith.constant 1 : index
    %c0_165 = arith.constant 0 : index
    %c128_166 = arith.constant 128 : index
    %202 = vector.load %arg8[%c1_164, %c0_165, %c128_166] : memref<2x8x512xf32, #tpu.memory_space<vmem>>, vector<1x8x256xf32>
    %203 = vector.shape_cast %202 : vector<1x8x256xf32> to vector<8x256xf32>
    %c32_167 = arith.constant 32 : index
    %c256_168 = arith.constant 256 : index
    %204 = vector.load %arg9[%c32_167, %c256_168] : memref<72x512xf32, #tpu.memory_space<vmem>>, vector<8x256xf32>
    tpu.vector_store %arg9[%c32_167, %c256_168], %203 {strides = array<i32>} : memref<72x512xf32, #tpu.memory_space<vmem>>, vector<8x256xf32>,
    %c0_169 = arith.constant 0 : index
    %c0_170 = arith.constant 0 : index
    %c129_171 = arith.constant 129 : index
    %205 = vector.load %arg8[%c0_169, %c0_170, %c129_171] : memref<2x8x512xf32, #tpu.memory_space<vmem>>, vector<1x8x256xf32>
    %206 = vector.shape_cast %205 : vector<1x8x256xf32> to vector<8x256xf32>
    %207 = vector.broadcast %29 : vector<1x256xf32> to vector<8x256xf32>
    %208 = arith.mulf %206, %207 : vector<8x256xf32>
    %c40_172 = arith.constant 40 : index
    %c0_173 = arith.constant 0 : index
    %209 = vector.load %arg9[%c40_172, %c0_173] : memref<72x512xf32, #tpu.memory_space<vmem>>, vector<8x256xf32>
    tpu.vector_store %arg9[%c40_172, %c0_173], %208 {strides = array<i32>} : memref<72x512xf32, #tpu.memory_space<vmem>>, vector<8x256xf32>,
    %c1_174 = arith.constant 1 : index
    %c0_175 = arith.constant 0 : index
    %c129_176 = arith.constant 129 : index
    %210 = vector.load %arg8[%c1_174, %c0_175, %c129_176] : memref<2x8x512xf32, #tpu.memory_space<vmem>>, vector<1x8x256xf32>
    %211 = vector.shape_cast %210 : vector<1x8x256xf32> to vector<8x256xf32>
    %212 = vector.broadcast %29 : vector<1x256xf32> to vector<8x256xf32>
    %213 = arith.mulf %211, %212 : vector<8x256xf32>
    %c40_177 = arith.constant 40 : index
    %c256_178 = arith.constant 256 : index
    %214 = vector.load %arg9[%c40_177, %c256_178] : memref<72x512xf32, #tpu.memory_space<vmem>>, vector<8x256xf32>
    tpu.vector_store %arg9[%c40_177, %c256_178], %213 {strides = array<i32>} : memref<72x512xf32, #tpu.memory_space<vmem>>, vector<8x256xf32>,
    %c0_179 = arith.constant 0 : index
    %c0_180 = arith.constant 0 : index
    %c143_181 = arith.constant 143 : index
    %215 = vector.load %arg8[%c0_179, %c0_180, %c143_181] : memref<2x8x512xf32, #tpu.memory_space<vmem>>, vector<1x8x256xf32>
    %216 = vector.shape_cast %215 : vector<1x8x256xf32> to vector<8x256xf32>
    %217 = vector.broadcast %24 : vector<1x256xf32> to vector<8x256xf32>
    %218 = arith.mulf %216, %217 : vector<8x256xf32>
    %c48_182 = arith.constant 48 : index
    %c0_183 = arith.constant 0 : index
    %219 = vector.load %arg9[%c48_182, %c0_183] : memref<72x512xf32, #tpu.memory_space<vmem>>, vector<8x256xf32>
    tpu.vector_store %arg9[%c48_182, %c0_183], %218 {strides = array<i32>} : memref<72x512xf32, #tpu.memory_space<vmem>>, vector<8x256xf32>,
    %c1_184 = arith.constant 1 : index
    %c0_185 = arith.constant 0 : index
    %c143_186 = arith.constant 143 : index
    %220 = vector.load %arg8[%c1_184, %c0_185, %c143_186] : memref<2x8x512xf32, #tpu.memory_space<vmem>>, vector<1x8x256xf32>
    %221 = vector.shape_cast %220 : vector<1x8x256xf32> to vector<8x256xf32>
    %222 = vector.broadcast %24 : vector<1x256xf32> to vector<8x256xf32>
    %223 = arith.mulf %221, %222 : vector<8x256xf32>
    %c48_187 = arith.constant 48 : index
    %c256_188 = arith.constant 256 : index
    %224 = vector.load %arg9[%c48_187, %c256_188] : memref<72x512xf32, #tpu.memory_space<vmem>>, vector<8x256xf32>
    tpu.vector_store %arg9[%c48_187, %c256_188], %223 {strides = array<i32>} : memref<72x512xf32, #tpu.memory_space<vmem>>, vector<8x256xf32>,
    %c0_189 = arith.constant 0 : index
    %c0_190 = arith.constant 0 : index
    %c144_191 = arith.constant 144 : index
    %225 = vector.load %arg8[%c0_189, %c0_190, %c144_191] : memref<2x8x512xf32, #tpu.memory_space<vmem>>, vector<1x8x256xf32>
    %226 = vector.shape_cast %225 : vector<1x8x256xf32> to vector<8x256xf32>
    %c56_192 = arith.constant 56 : index
    %c0_193 = arith.constant 0 : index
    %227 = vector.load %arg9[%c56_192, %c0_193] : memref<72x512xf32, #tpu.memory_space<vmem>>, vector<8x256xf32>
    tpu.vector_store %arg9[%c56_192, %c0_193], %226 {strides = array<i32>} : memref<72x512xf32, #tpu.memory_space<vmem>>, vector<8x256xf32>,
    %c1_194 = arith.constant 1 : index
    %c0_195 = arith.constant 0 : index
    %c144_196 = arith.constant 144 : index
    %228 = vector.load %arg8[%c1_194, %c0_195, %c144_196] : memref<2x8x512xf32, #tpu.memory_space<vmem>>, vector<1x8x256xf32>
    %229 = vector.shape_cast %228 : vector<1x8x256xf32> to vector<8x256xf32>
    %c56_197 = arith.constant 56 : index
    %c256_198 = arith.constant 256 : index
    %230 = vector.load %arg9[%c56_197, %c256_198] : memref<72x512xf32, #tpu.memory_space<vmem>>, vector<8x256xf32>
    tpu.vector_store %arg9[%c56_197, %c256_198], %229 {strides = array<i32>} : memref<72x512xf32, #tpu.memory_space<vmem>>, vector<8x256xf32>,
    %c0_199 = arith.constant 0 : index
    %c0_200 = arith.constant 0 : index
    %c145_201 = arith.constant 145 : index
    %231 = vector.load %arg8[%c0_199, %c0_200, %c145_201] : memref<2x8x512xf32, #tpu.memory_space<vmem>>, vector<1x8x256xf32>
    %232 = vector.shape_cast %231 : vector<1x8x256xf32> to vector<8x256xf32>
    %233 = vector.broadcast %29 : vector<1x256xf32> to vector<8x256xf32>
    %234 = arith.mulf %232, %233 : vector<8x256xf32>
    %c64_202 = arith.constant 64 : index
    %c0_203 = arith.constant 0 : index
    %235 = vector.load %arg9[%c64_202, %c0_203] : memref<72x512xf32, #tpu.memory_space<vmem>>, vector<8x256xf32>
    tpu.vector_store %arg9[%c64_202, %c0_203], %234 {strides = array<i32>} : memref<72x512xf32, #tpu.memory_space<vmem>>, vector<8x256xf32>,
    %c1_204 = arith.constant 1 : index
    %c0_205 = arith.constant 0 : index
    %c145_206 = arith.constant 145 : index
    %236 = vector.load %arg8[%c1_204, %c0_205, %c145_206] : memref<2x8x512xf32, #tpu.memory_space<vmem>>, vector<1x8x256xf32>
    %237 = vector.shape_cast %236 : vector<1x8x256xf32> to vector<8x256xf32>
    %238 = vector.broadcast %29 : vector<1x256xf32> to vector<8x256xf32>
    %239 = arith.mulf %237, %238 : vector<8x256xf32>
    %c64_207 = arith.constant 64 : index
    %c256_208 = arith.constant 256 : index
    %240 = vector.load %arg9[%c64_207, %c256_208] : memref<72x512xf32, #tpu.memory_space<vmem>>, vector<8x256xf32>
    tpu.vector_store %arg9[%c64_207, %c256_208], %239 {strides = array<i32>} : memref<72x512xf32, #tpu.memory_space<vmem>>, vector<8x256xf32>,
    %c0_209 = arith.constant 0 : index
    %c0_210 = arith.constant 0 : index
    %241 = vector.load %arg9[%c0_209, %c0_210] : memref<72x512xf32, #tpu.memory_space<vmem>>, vector<72x512xf32>
    %cst_211 = arith.constant dense<0.000000e+00> : vector<8x512xf32>
    %242 = tpu.matmul %160, %241, %cst_211 {dimension_numbers = #tpu.dot_dimension_numbers<[1], [0], [0], [1], [0, 0, 1, 1], [], []>} : vector<8x72xf32>, vector<72x512xf32>, vector<8x512xf32> -> vector<8x512xf32>
    %243 = arith.mulf %241, %241 : vector<72x512xf32>
    %cst_212 = arith.constant dense<0.000000e+00> : vector<512xf32>
    %244 = vector.multi_reduction <add>, %243, %cst_212 [0] : vector<72x512xf32> to vector<512xf32>
    %245 = vector.shape_cast %244 : vector<512xf32> to vector<1x512xf32>
    %cst_213 = arith.constant 9.99999997E-7 : f32
    %246 = vector.broadcast %cst_213 : f32 to vector<1x512xf32>
    %247 = arith.addf %245, %246 : vector<1x512xf32>
    %248 = math.rsqrt %247 : vector<1x512xf32>
    %249 = math.absf %242 : vector<8x512xf32>
    %250 = vector.broadcast %248 : vector<1x512xf32> to vector<8x512xf32>
    %251 = arith.mulf %249, %250 : vector<8x512xf32>
    %252 = arith.mulf %251, %242 : vector<8x512xf32>
    %cst_214 = arith.constant dense<0.000000e+00> : vector<8xf32>
    %253 = vector.multi_reduction <add>, %252, %cst_214 [1] : vector<8x512xf32> to vector<8xf32>
    %254 = vector.shape_cast %253 : vector<8xf32> to vector<8x1xf32>
    %cst_215 = arith.constant 0.001953125 : f32
    %255 = vector.broadcast %cst_215 : f32 to vector<8x1xf32>
    %256 = arith.mulf %254, %255 : vector<8x1xf32>
    %257 = arith.mulf %252, %252 : vector<8x512xf32>
    %cst_216 = arith.constant dense<0.000000e+00> : vector<8xf32>
    %258 = vector.multi_reduction <add>, %257, %cst_216 [1] : vector<8x512xf32> to vector<8xf32>
    %259 = vector.shape_cast %258 : vector<8xf32> to vector<8x1xf32>
    %cst_217 = arith.constant 0.001953125 : f32
    %260 = vector.broadcast %cst_217 : f32 to vector<8x1xf32>
    %261 = arith.mulf %259, %260 : vector<8x1xf32>
    %262 = arith.mulf %256, %256 : vector<8x1xf32>
    %263 = arith.subf %261, %262 : vector<8x1xf32>
    %cst_218 = arith.constant 9.99999974E-6 : f32
    %264 = vector.broadcast %cst_218 : f32 to vector<8x1xf32>
    %265 = arith.addf %263, %264 : vector<8x1xf32>
    %266 = math.rsqrt %265 : vector<8x1xf32>
    %267 = arith.mulf %266, %162 : vector<8x1xf32>
    %268 = vector.broadcast %267 : vector<8x1xf32> to vector<8x512xf32>
    %269 = arith.mulf %252, %268 : vector<8x512xf32>
    %270 = vector.extract_strided_slice %269 {offsets = [0, 0], sizes = [8, 256], strides = [1, 1]} : vector<8x512xf32> to vector<8x256xf32>
    %c0_219 = arith.constant 0 : index
    %c0_220 = arith.constant 0 : index
    %c0_221 = arith.constant 0 : index
    %271 = vector.load %arg7[%c0_219, %c0_220, %c0_221] : memref<2x8x256xf32, #tpu.memory_space<vmem>>, vector<1x8x256xf32>
    %272 = vector.shape_cast %271 : vector<1x8x256xf32> to vector<8x256xf32>
    %273 = arith.addf %270, %272 : vector<8x256xf32>
    %c0_222 = arith.constant 0 : index
    %c0_223 = arith.constant 0 : index
    %c0_224 = arith.constant 0 : index
    %c0_225 = arith.constant 0 : index
    %274 = vector.load %arg6[%c0_222, %c0_223, %c0_224, %c0_225] : memref<1x2x8x256xf32, #tpu.memory_space<vmem>>, vector<1x1x8x256xf32>
    %275 = vector.shape_cast %274 : vector<1x1x8x256xf32> to vector<8x256xf32>
    %276 = vector.shape_cast %273 : vector<8x256xf32> to vector<1x1x8x256xf32>
    tpu.vector_store %arg6[%c0_222, %c0_223, %c0_224, %c0_225], %276 {strides = array<i32>} : memref<1x2x8x256xf32, #tpu.memory_space<vmem>>, vector<1x1x8x256xf32>,
    %c0_226 = arith.constant 0 : index
    %c0_227 = arith.constant 0 : index
    %c0_228 = arith.constant 0 : index
    %277 = vector.load %arg7[%c0_226, %c0_227, %c0_228] : memref<2x8x256xf32, #tpu.memory_space<vmem>>, vector<1x8x256xf32>
    %278 = vector.shape_cast %277 : vector<1x8x256xf32> to vector<8x256xf32>
    %279 = vector.shape_cast %273 : vector<8x256xf32> to vector<1x8x256xf32>
    tpu.vector_store %arg7[%c0_226, %c0_227, %c0_228], %279 {strides = array<i32>} : memref<2x8x256xf32, #tpu.memory_space<vmem>>, vector<1x8x256xf32>,
    %280 = vector.extract_strided_slice %269 {offsets = [0, 256], sizes = [8, 256], strides = [1, 1]} : vector<8x512xf32> to vector<8x256xf32>
    %c1_229 = arith.constant 1 : index
    %c0_230 = arith.constant 0 : index
    %c0_231 = arith.constant 0 : index
    %281 = vector.load %arg7[%c1_229, %c0_230, %c0_231] : memref<2x8x256xf32, #tpu.memory_space<vmem>>, vector<1x8x256xf32>
    %282 = vector.shape_cast %281 : vector<1x8x256xf32> to vector<8x256xf32>
    %283 = arith.addf %280, %282 : vector<8x256xf32>
    %c0_232 = arith.constant 0 : index
    %c1_233 = arith.constant 1 : index
    %c0_234 = arith.constant 0 : index
    %c0_235 = arith.constant 0 : index
    %284 = vector.load %arg6[%c0_232, %c1_233, %c0_234, %c0_235] : memref<1x2x8x256xf32, #tpu.memory_space<vmem>>, vector<1x1x8x256xf32>
    %285 = vector.shape_cast %284 : vector<1x1x8x256xf32> to vector<8x256xf32>
    %286 = vector.shape_cast %283 : vector<8x256xf32> to vector<1x1x8x256xf32>
    tpu.vector_store %arg6[%c0_232, %c1_233, %c0_234, %c0_235], %286 {strides = array<i32>} : memref<1x2x8x256xf32, #tpu.memory_space<vmem>>, vector<1x1x8x256xf32>,
    %c1_236 = arith.constant 1 : index
    %c0_237 = arith.constant 0 : index
    %c0_238 = arith.constant 0 : index
    %287 = vector.load %arg7[%c1_236, %c0_237, %c0_238] : memref<2x8x256xf32, #tpu.memory_space<vmem>>, vector<1x8x256xf32>
    %288 = vector.shape_cast %287 : vector<1x8x256xf32> to vector<8x256xf32>
    %289 = vector.shape_cast %283 : vector<8x256xf32> to vector<1x8x256xf32>
    tpu.vector_store %arg7[%c1_236, %c0_237, %c0_238], %289 {strides = array<i32>} : memref<2x8x256xf32, #tpu.memory_space<vmem>>, vector<1x8x256xf32>,
    return
  }
  func.func @transform_0(%arg0: i32) -> (i32, i32, i32) {
    %c0_i32 = arith.constant 0 : i32
    %c0_i32_0 = arith.constant 0 : i32
    %c0_i32_1 = arith.constant 0 : i32
    %c0_i32_2 = arith.constant 0 : i32
    return %c0_i32, %c0_i32_0, %c0_i32_1 : i32, i32, i32
  }
  func.func @transform_1(%arg0: i32) -> (i32, i32, i32) {
    %c0_i32 = arith.constant 0 : i32
    %c0_i32_0 = arith.constant 0 : i32
    %c0_i32_1 = arith.constant 0 : i32
    return %arg0, %c0_i32, %c0_i32_0 : i32, i32, i32
  }
  func.func @transform_2(%arg0: i32) -> (i32, i32, i32) {
    %c0_i32 = arith.constant 0 : i32
    %c0_i32_0 = arith.constant 0 : i32
    %c0_i32_1 = arith.constant 0 : i32
    return %arg0, %c0_i32, %c0_i32_0 : i32, i32, i32
  }
  func.func @transform_3(%arg0: i32) -> (i32, i32, i32) {
    %c0_i32 = arith.constant 0 : i32
    %c0_i32_0 = arith.constant 0 : i32
    %c0_i32_1 = arith.constant 0 : i32
    return %arg0, %c0_i32, %c0_i32_0 : i32, i32, i32
  }
  func.func @transform_4(%arg0: i32) -> (i32, i32, i32) {
    %c0_i32 = arith.constant 0 : i32
    %c0_i32_0 = arith.constant 0 : i32
    %c0_i32_1 = arith.constant 0 : i32
    return %arg0, %c0_i32, %c0_i32_0 : i32, i32, i32
  }
  func.func @transform_5(%arg0: i32) -> (i32, i32, i32, i32) {
    %c0_i32 = arith.constant 0 : i32
    %c0_i32_0 = arith.constant 0 : i32
    %c0_i32_1 = arith.constant 0 : i32
    %c0_i32_2 = arith.constant 0 : i32
    return %arg0, %c0_i32, %c0_i32_0, %c0_i32_1 : i32, i32, i32, i32
  }
}

</mosaic_0001>

<llo_original>
// kernel: squeeze.3
$region0: #{squeeze.3}
  %s0 = inlined_call_operand.vmem [shape: f32[1,2,8,256], index: 0, kind: input, shape index: {}]
  %s1 = inlined_call_operand.hbm [shape: f32[2,8,16,16], index: 1, kind: output, shape index: {}]
  $region1: #{squeeze.3} parent=0
    #allocation0 [shape = 'u8[131072]{0}', space=vmem, size = 0x20000, scoped, tag = 'operand span for operand 1']
    #allocation1 [shape = 's32[1]{0}', space=sflag, size = 0x4, scoped, tag = 'scoped memory for squeeze.3']
    %2 = vsyncpa [#allocation1], 0
    %v3 = vld [vmem:[%s0] sm:$0xff]
    %vm4 = vcmask 130048
    %5 = vst.msk [vmem:[#allocation0] ss:$16 sm:$0x3] %vm4, %v3
    %6 = vst.msk [vmem:[#allocation0] ss:$16 sm:$0xc] %vm4, %v3
    %7 = vst.msk [vmem:[#allocation0] ss:$16 sm:$0x30] %vm4, %v3
    %8 = vst.msk [vmem:[#allocation0] ss:$16 sm:$0xc0] %vm4, %v3
    %s9 = scalar_lea.vmem %s0, 8
    %v10 = vld [vmem:[%s9] sm:$0xff]
    %vm11 = vcmask 130048
    %s12 = scalar_lea.vmem [#allocation0], 8
    %13 = vst.msk [vmem:[%s12] ss:$16 sm:$0x3] %vm11, %v10
    %s14 = scalar_lea.vmem [#allocation0], 8
    %15 = vst.msk [vmem:[%s14] ss:$16 sm:$0xc] %vm11, %v10
    %s16 = scalar_lea.vmem [#allocation0], 8
    %17 = vst.msk [vmem:[%s16] ss:$16 sm:$0x30] %vm11, %v10
    %s18 = scalar_lea.vmem [#allocation0], 8
    %19 = vst.msk [vmem:[%s18] ss:$16 sm:$0xc0] %vm11, %v10
    %s20 = scalar_lea.vmem %s0, 16
    %v21 = vld [vmem:[%s20] sm:$0xff]
    %vm22 = vcmask 130048
    %s23 = scalar_lea.vmem [#allocation0], 128
    %24 = vst.msk [vmem:[%s23] ss:$16 sm:$0x3] %vm22, %v21
    %s25 = scalar_lea.vmem [#allocation0], 128
    %26 = vst.msk [vmem:[%s25] ss:$16 sm:$0xc] %vm22, %v21
    %s27 = scalar_lea.vmem [#allocation0], 128
    %28 = vst.msk [vmem:[%s27] ss:$16 sm:$0x30] %vm22, %v21
    %s29 = scalar_lea.vmem [#allocation0], 128
    %30 = vst.msk [vmem:[%s29] ss:$16 sm:$0xc0] %vm22, %v21
    %s31 = scalar_lea.vmem %s0, 24
    %v32 = vld [vmem:[%s31] sm:$0xff]
    %vm33 = vcmask 130048
    %s34 = scalar_lea.vmem [#allocation0], 136
    %35 = vst.msk [vmem:[%s34] ss:$16 sm:$0x3] %vm33, %v32
    %s36 = scalar_lea.vmem [#allocation0], 136
    %37 = vst.msk [vmem:[%s36] ss:$16 sm:$0xc] %vm33, %v32
    %s38 = scalar_lea.vmem [#allocation0], 136
    %39 = vst.msk [vmem:[%s38] ss:$16 sm:$0x30] %vm33, %v32
    %s40 = scalar_lea.vmem [#allocation0], 136
    %41 = vst.msk [vmem:[%s40] ss:$16 sm:$0xc0] %vm33, %v32
    %v42 = vld.sshfl [vmem:[%s0] sm:$0xff pattern:$0xb3a29180]
    %43 = vrot.lane.b32.xlu0 %v42, 112
    %v44 = vpop.permute.xlu0 %43
    %vm45 = vcmask 130048
    %s46 = scalar_lea.vmem [#allocation0], 1
    %47 = vst.msk [vmem:[%s46] ss:$8 sm:$0xf] %vm45, %v44
    %s48 = scalar_lea.vmem [#allocation0], 1
    %49 = vst.msk [vmem:[%s48] ss:$8 sm:$0xf0] %vm45, %v44
    %s50 = scalar_lea.vmem %s0, 4
    %v51 = vld.sshfl [vmem:[%s50] sm:$0xff pattern:$0xb3a29180]
    %52 = vrot.lane.b32.xlu0 %v51, 112
    %v53 = vpop.permute.xlu0 %52
    %vm54 = vcmask 130048
    %s55 = scalar_lea.vmem [#allocation0], 65
    %56 = vst.msk [vmem:[%s55] ss:$8 sm:$0xf] %vm54, %v53
    %s57 = scalar_lea.vmem [#allocation0], 65
    %58 = vst.msk [vmem:[%s57] ss:$8 sm:$0xf0] %vm54, %v53
    %s59 = scalar_lea.vmem %s0, 16
    %v60 = vld.sshfl [vmem:[%s59] sm:$0xff pattern:$0xb3a29180]
    %61 = vrot.lane.b32.xlu0 %v60, 112
    %v62 = vpop.permute.xlu0 %61
    %vm63 = vcmask 130048
    %s64 = scalar_lea.vmem [#allocation0], 129
    %65 = vst.msk [vmem:[%s64] ss:$8 sm:$0xf] %vm63, %v62
    %s66 = scalar_lea.vmem [#allocation0], 129
    %67 = vst.msk [vmem:[%s66] ss:$8 sm:$0xf0] %vm63, %v62
    %s68 = scalar_lea.vmem %s0, 20
    %v69 = vld.sshfl [vmem:[%s68] sm:$0xff pattern:$0xb3a29180]
    %70 = vrot.lane.b32.xlu0 %v69, 112
    %v71 = vpop.permute.xlu0 %70
    %vm72 = vcmask 130048
    %s73 = scalar_lea.vmem [#allocation0], 193
    %74 = vst.msk [vmem:[%s73] ss:$8 sm:$0xf] %vm72, %v71
    %s75 = scalar_lea.vmem [#allocation0], 193
    %76 = vst.msk [vmem:[%s75] ss:$8 sm:$0xf0] %vm72, %v71
    %v77 = vld.sshfl [vmem:[%s0] sm:$0xff pattern:$0xb3a29180]
    %78 = vrot.lane.b32.xlu0 %v77, 96
    %v79 = vpop.permute.xlu0 %78
    %vm80 = vcmask 130048
    %s81 = scalar_lea.vmem [#allocation0], 2
    %82 = vst.msk [vmem:[%s81] ss:$8 sm:$0xf] %vm80, %v79
    %s83 = scalar_lea.vmem [#allocation0], 2
    %84 = vst.msk [vmem:[%s83] ss:$8 sm:$0xf0] %vm80, %v79
    %s85 = scalar_lea.vmem %s0, 4
    %v86 = vld.sshfl [vmem:[%s85] sm:$0xff pattern:$0xb3a29180]
    %87 = vrot.lane.b32.xlu0 %v86, 96
    %v88 = vpop.permute.xlu0 %87
    %vm89 = vcmask 130048
    %s90 = scalar_lea.vmem [#allocation0], 66
    %91 = vst.msk [vmem:[%s90] ss:$8 sm:$0xf] %vm89, %v88
    %s92 = scalar_lea.vmem [#allocation0], 66
    %93 = vst.msk [vmem:[%s92] ss:$8 sm:$0xf0] %vm89, %v88
    %s94 = scalar_lea.vmem %s0, 16
    %v95 = vld.sshfl [vmem:[%s94] sm:$0xff pattern:$0xb3a29180]
    %96 = vrot.lane.b32.xlu0 %v95, 96
    %v97 = vpop.permute.xlu0 %96
    %vm98 = vcmask 130048
    %s99 = scalar_lea.vmem [#allocation0], 130
    %100 = vst.msk [vmem:[%s99] ss:$8 sm:$0xf] %vm98, %v97
    %s101 = scalar_lea.vmem [#allocation0], 130
    %102 = vst.msk [vmem:[%s101] ss:$8 sm:$0xf0] %vm98, %v97
    %s103 = scalar_lea.vmem %s0, 20
    %v104 = vld.sshfl [vmem:[%s103] sm:$0xff pattern:$0xb3a29180]
    %105 = vrot.lane.b32.xlu0 %v104, 96
    %v106 = vpop.permute.xlu0 %105
    %vm107 = vcmask 130048
    %s108 = scalar_lea.vmem [#allocation0], 194
    %109 = vst.msk [vmem:[%s108] ss:$8 sm:$0xf] %vm107, %v106
    %s110 = scalar_lea.vmem [#allocation0], 194
    %111 = vst.msk [vmem:[%s110] ss:$8 sm:$0xf0] %vm107, %v106
    %v112 = vld.sshfl [vmem:[%s0] sm:$0xff pattern:$0xb3a29180]
    %113 = vrot.lane.b32.xlu0 %v112, 80
    %v114 = vpop.permute.xlu0 %113
    %vm115 = vcmask 130048
    %s116 = scalar_lea.vmem [#allocation0], 3
    %117 = vst.msk [vmem:[%s116] ss:$8 sm:$0xf] %vm115, %v114
    %s118 = scalar_lea.vmem [#allocation0], 3
    %119 = vst.msk [vmem:[%s118] ss:$8 sm:$0xf0] %vm115, %v114
    %s120 = scalar_lea.vmem %s0, 4
    %v121 = vld.sshfl [vmem:[%s120] sm:$0xff pattern:$0xb3a29180]
    %122 = vrot.lane.b32.xlu0 %v121, 80
    %v123 = vpop.permute.xlu0 %122
    %vm124 = vcmask 130048
    %s125 = scalar_lea.vmem [#allocation0], 67
    %126 = vst.msk [vmem:[%s125] ss:$8 sm:$0xf] %vm124, %v123
    %s127 = scalar_lea.vmem [#allocation0], 67
    %128 = vst.msk [vmem:[%s127] ss:$8 sm:$0xf0] %vm124, %v123
    %s129 = scalar_lea.vmem %s0, 16
    %v130 = vld.sshfl [vmem:[%s129] sm:$0xff pattern:$0xb3a29180]
    %131 = vrot.lane.b32.xlu0 %v130, 80
    %v132 = vpop.permute.xlu0 %131
    %vm133 = vcmask 130048
    %s134 = scalar_lea.vmem [#allocation0], 131
    %135 = vst.msk [vmem:[%s134] ss:$8 sm:$0xf] %vm133, %v132
    %s136 = scalar_lea.vmem [#allocation0], 131
    %137 = vst.msk [vmem:[%s136] ss:$8 sm:$0xf0] %vm133, %v132
    %s138 = scalar_lea.vmem %s0, 20
    %v139 = vld.sshfl [vmem:[%s138] sm:$0xff pattern:$0xb3a29180]
    %140 = vrot.lane.b32.xlu0 %v139, 80
    %v141 = vpop.permute.xlu0 %140
    %vm142 = vcmask 130048
    %s143 = scalar_lea.vmem [#allocation0], 195
    %144 = vst.msk [vmem:[%s143] ss:$8 sm:$0xf] %vm142, %v141
    %s145 = scalar_lea.vmem [#allocation0], 195
    %146 = vst.msk [vmem:[%s145] ss:$8 sm:$0xf0] %vm142, %v141
    %v147 = vld.sshfl [vmem:[%s0] sm:$0xff pattern:$0xb3a29180]
    %148 = vrot.lane.b32.xlu0 %v147, 64
    %v149 = vpop.permute.xlu0 %148
    %vm150 = vcmask 130048
    %s151 = scalar_lea.vmem [#allocation0], 4
    %152 = vst.msk [vmem:[%s151] ss:$8 sm:$0xf] %vm150, %v149
    %s153 = scalar_lea.vmem [#allocation0], 4
    %154 = vst.msk [vmem:[%s153] ss:$8 sm:$0xf0] %vm150, %v149
    %s155 = scalar_lea.vmem %s0, 4
    %v156 = vld.sshfl [vmem:[%s155] sm:$0xff pattern:$0xb3a29180]
    %157 = vrot.lane.b32.xlu0 %v156, 64
    %v158 = vpop.permute.xlu0 %157
    %vm159 = vcmask 130048
    %s160 = scalar_lea.vmem [#allocation0], 68
    %161 = vst.msk [vmem:[%s160] ss:$8 sm:$0xf] %vm159, %v158
    %s162 = scalar_lea.vmem [#allocation0], 68
    %163 = vst.msk [vmem:[%s162] ss:$8 sm:$0xf0] %vm159, %v158
    %s164 = scalar_lea.vmem %s0, 16
    %v165 = vld.sshfl [vmem:[%s164] sm:$0xff pattern:$0xb3a29180]
    %166 = vrot.lane.b32.xlu0 %v165, 64
    %v167 = vpop.permute.xlu0 %166
    %vm168 = vcmask 130048
    %s169 = scalar_lea.vmem [#allocation0], 132
    %170 = vst.msk [vmem:[%s169] ss:$8 sm:$0xf] %vm168, %v167
    %s171 = scalar_lea.vmem [#allocation0], 132
    %172 = vst.msk [vmem:[%s171] ss:$8 sm:$0xf0] %vm168, %v167
    %s173 = scalar_lea.vmem %s0, 20
    %v174 = vld.sshfl [vmem:[%s173] sm:$0xff pattern:$0xb3a29180]
    %175 = vrot.lane.b32.xlu0 %v174, 64
    %v176 = vpop.permute.xlu0 %175
    %vm177 = vcmask 130048
    %s178 = scalar_lea.vmem [#allocation0], 196
    %179 = vst.msk [vmem:[%s178] ss:$8 sm:$0xf] %vm177, %v176
    %s180 = scalar_lea.vmem [#allocation0], 196
    %181 = vst.msk [vmem:[%s180] ss:$8 sm:$0xf0] %vm177, %v176
    %v182 = vld.sshfl [vmem:[%s0] sm:$0xff pattern:$0xb3a29180]
    %183 = vrot.lane.b32.xlu0 %v182, 48
    %v184 = vpop.permute.xlu0 %183
    %vm185 = vcmask 130048
    %s186 = scalar_lea.vmem [#allocation0], 5
    %187 = vst.msk [vmem:[%s186] ss:$8 sm:$0xf] %vm185, %v184
    %s188 = scalar_lea.vmem [#allocation0], 5
    %189 = vst.msk [vmem:[%s188] ss:$8 sm:$0xf0] %vm185, %v184
    %s190 = scalar_lea.vmem %s0, 4
    %v191 = vld.sshfl [vmem:[%s190] sm:$0xff pattern:$0xb3a29180]
    %192 = vrot.lane.b32.xlu0 %v191, 48
    %v193 = vpop.permute.xlu0 %192
    %vm194 = vcmask 130048
    %s195 = scalar_lea.vmem [#allocation0], 69
    %196 = vst.msk [vmem:[%s195] ss:$8 sm:$0xf] %vm194, %v193
    %s197 = scalar_lea.vmem [#allocation0], 69
    %198 = vst.msk [vmem:[%s197] ss:$8 sm:$0xf0] %vm194, %v193
    %s199 = scalar_lea.vmem %s0, 16
    %v200 = vld.sshfl [vmem:[%s199] sm:$0xff pattern:$0xb3a29180]
    %201 = vrot.lane.b32.xlu0 %v200, 48
    %v202 = vpop.permute.xlu0 %201
    %vm203 = vcmask 130048
    %s204 = scalar_lea.vmem [#allocation0], 133
    %205 = vst.msk [vmem:[%s204] ss:$8 sm:$0xf] %vm203, %v202
    %s206 = scalar_lea.vmem [#allocation0], 133
    %207 = vst.msk [vmem:[%s206] ss:$8 sm:$0xf0] %vm203, %v202
    %s208 = scalar_lea.vmem %s0, 20
    %v209 = vld.sshfl [vmem:[%s208] sm:$0xff pattern:$0xb3a29180]
    %210 = vrot.lane.b32.xlu0 %v209, 48
    %v211 = vpop.permute.xlu0 %210
    %vm212 = vcmask 130048
    %s213 = scalar_lea.vmem [#allocation0], 197
    %214 = vst.msk [vmem:[%s213] ss:$8 sm:$0xf] %vm212, %v211
    %s215 = scalar_lea.vmem [#allocation0], 197
    %216 = vst.msk [vmem:[%s215] ss:$8 sm:$0xf0] %vm212, %v211
    %v217 = vld.sshfl [vmem:[%s0] sm:$0xff pattern:$0xb3a29180]
    %218 = vrot.lane.b32.xlu0 %v217, 32
    %v219 = vpop.permute.xlu0 %218
    %vm220 = vcmask 130048
    %s221 = scalar_lea.vmem [#allocation0], 6
    %222 = vst.msk [vmem:[%s221] ss:$8 sm:$0xf] %vm220, %v219
    %s223 = scalar_lea.vmem [#allocation0], 6
    %224 = vst.msk [vmem:[%s223] ss:$8 sm:$0xf0] %vm220, %v219
    %s225 = scalar_lea.vmem %s0, 4
    %v226 = vld.sshfl [vmem:[%s225] sm:$0xff pattern:$0xb3a29180]
    %227 = vrot.lane.b32.xlu0 %v226, 32
    %v228 = vpop.permute.xlu0 %227
    %vm229 = vcmask 130048
    %s230 = scalar_lea.vmem [#allocation0], 70
    %231 = vst.msk [vmem:[%s230] ss:$8 sm:$0xf] %vm229, %v228
    %s232 = scalar_lea.vmem [#allocation0], 70
    %233 = vst.msk [vmem:[%s232] ss:$8 sm:$0xf0] %vm229, %v228
    %s234 = scalar_lea.vmem %s0, 16
    %v235 = vld.sshfl [vmem:[%s234] sm:$0xff pattern:$0xb3a29180]
    %236 = vrot.lane.b32.xlu0 %v235, 32
    %v237 = vpop.permute.xlu0 %236
    %vm238 = vcmask 130048
    %s239 = scalar_lea.vmem [#allocation0], 134
    %240 = vst.msk [vmem:[%s239] ss:$8 sm:$0xf] %vm238, %v237
    %s241 = scalar_lea.vmem [#allocation0], 134
    %242 = vst.msk [vmem:[%s241] ss:$8 sm:$0xf0] %vm238, %v237
    %s243 = scalar_lea.vmem %s0, 20
    %v244 = vld.sshfl [vmem:[%s243] sm:$0xff pattern:$0xb3a29180]
    %245 = vrot.lane.b32.xlu0 %v244, 32
    %v246 = vpop.permute.xlu0 %245
    %vm247 = vcmask 130048
    %s248 = scalar_lea.vmem [#allocation0], 198
    %249 = vst.msk [vmem:[%s248] ss:$8 sm:$0xf] %vm247, %v246
    %s250 = scalar_lea.vmem [#allocation0], 198
    %251 = vst.msk [vmem:[%s250] ss:$8 sm:$0xf0] %vm247, %v246
    %v252 = vld.sshfl [vmem:[%s0] sm:$0xff pattern:$0xb3a29180]
    %253 = vrot.lane.b32.xlu0 %v252, 16
    %v254 = vpop.permute.xlu0 %253
    %vm255 = vcmask 130048
    %s256 = scalar_lea.vmem [#allocation0], 7
    %257 = vst.msk [vmem:[%s256] ss:$8 sm:$0xf] %vm255, %v254
    %s258 = scalar_lea.vmem [#allocation0], 7
    %259 = vst.msk [vmem:[%s258] ss:$8 sm:$0xf0] %vm255, %v254
    %s260 = scalar_lea.vmem %s0, 4
    %v261 = vld.sshfl [vmem:[%s260] sm:$0xff pattern:$0xb3a29180]
    %262 = vrot.lane.b32.xlu0 %v261, 16
    %v263 = vpop.permute.xlu0 %262
    %vm264 = vcmask 130048
    %s265 = scalar_lea.vmem [#allocation0], 71
    %266 = vst.msk [vmem:[%s265] ss:$8 sm:$0xf] %vm264, %v263
    %s267 = scalar_lea.vmem [#allocation0], 71
    %268 = vst.msk [vmem:[%s267] ss:$8 sm:$0xf0] %vm264, %v263
    %s269 = scalar_lea.vmem %s0, 16
    %v270 = vld.sshfl [vmem:[%s269] sm:$0xff pattern:$0xb3a29180]
    %271 = vrot.lane.b32.xlu0 %v270, 16
    %v272 = vpop.permute.xlu0 %271
    %vm273 = vcmask 130048
    %s274 = scalar_lea.vmem [#allocation0], 135
    %275 = vst.msk [vmem:[%s274] ss:$8 sm:$0xf] %vm273, %v272
    %s276 = scalar_lea.vmem [#allocation0], 135
    %277 = vst.msk [vmem:[%s276] ss:$8 sm:$0xf0] %vm273, %v272
    %s278 = scalar_lea.vmem %s0, 20
    %v279 = vld.sshfl [vmem:[%s278] sm:$0xff pattern:$0xb3a29180]
    %280 = vrot.lane.b32.xlu0 %v279, 16
    %v281 = vpop.permute.xlu0 %280
    %vm282 = vcmask 130048
    %s283 = scalar_lea.vmem [#allocation0], 199
    %284 = vst.msk [vmem:[%s283] ss:$8 sm:$0xf] %vm282, %v281
    %s285 = scalar_lea.vmem [#allocation0], 199
    %286 = vst.msk [vmem:[%s285] ss:$8 sm:$0xf0] %vm282, %v281
    %s288 = ssub.s32 4096, 4096
    %289 = vsyncadd [#allocation1], %s288
    %s291 = sshll.u32 [#allocation0], 4
    %s292 = int_to_ptr.vmem [resolvable:$true] %s291
    %294 = dma.vmem_to_hbm [thread:$0]  %s292, 4096, %s1, [#allocation1]
    %295 = dma.done [#allocation1], 4096
    %296 = vsyncpa [#allocation1], 1

// kernel: layer_forward.1
$region0: #{layer_forward.1}
  #allocation0 [shape = 'u32[]', space=smem, size = 0x4, offset = 0x4, fixed_abs, tag = 'smem constant byte address 0x4 - core index']
  #allocation1 [shape = 'u32[144,128]{1,0:T(1,128)}', space=vmem, size = 0x12000, scoped, tag = 'internal scratch']
  #allocation2 [shape = 'f32[2,8,256]{2,1,0:T(8,128)}', space=vmem, size = 0x4000, scoped, tag = 'scratch operand']
  #allocation3 [shape = 'f32[2,8,512]{2,1,0:T(8,128)}', space=vmem, size = 0x8000, scoped, tag = 'scratch operand']
  #allocation4 [shape = 'f32[72,512]{1,0:T(8,128)}', space=vmem, size = 0x24000, scoped, tag = 'scratch operand']
  %s0 = inlined_call_operand.vmem [shape: f32[2,8,256], index: 0, kind: input, shape index: {}]
  %s1 = inlined_call_operand.vmem [shape: f32[2,8,72], index: 1, kind: input, shape index: {}]
  %s2 = inlined_call_operand.vmem [shape: f32[2,8,1], index: 2, kind: input, shape index: {}]
  %s3 = inlined_call_operand.vmem [shape: f32[2,8,72], index: 3, kind: input, shape index: {}]
  %s4 = inlined_call_operand.vmem [shape: f32[2,8,1], index: 4, kind: input, shape index: {}]
  %s5 = inlined_call_operand.vmem [shape: f32[2,2,8,256], index: 5, kind: output, shape index: {}]
  %s6 = sld [smem:[#allocation0]]
  $region57: #{layer_forward.1} parent=0
    _
  %s8 = ssub.s32 1, %s6
  %s9 = scalar_select 0, %s8, %s6
  loop: start=0, step=1, limit=4
  $region2: #{layer_forward.1} parent=0 // loop_pre_header
    _
  $region3: #{layer_forward.1} parent=0 // loop_header
    %s11 = sphi 0, %s15
    %p12 = scmp.ge.s32.totalorder %s11, 4
    %s19 = sphi 0, %s19
    %s21 = sphi 0, %s19
    %s22 = sphi 0, %s21
    %s36 = sphi 0, %s22
    %s42 = sphi 0, %s44
    %s45 = sphi 0, %s42
    %s46 = sphi 0, %s45
    %s62 = sphi 0, %s46
    %s68 = sphi 0, %s70
    %s71 = sphi 0, %s68
    %s72 = sphi 0, %s71
    %s88 = sphi 0, %s72
    %s94 = sphi 0, %s96
    %s97 = sphi 0, %s94
    %s98 = sphi 0, %s97
    %s114 = sphi 0, %s98
    %s120 = sphi 0, %s122
    %s123 = sphi 0, %s120
    %s124 = sphi 0, %s123
    %s140 = sphi 0, %s124
    %s146 = sphi 0, %s148
    %s149 = sphi 0, %s146
    %s150 = sphi 0, %s149
    %s166 = sphi 0, %s150
  $region4: #{layer_forward.1} parent=0 // loop_header_branch
    %14 = sbr.rel (%p12) target = $region8
  $region5: #{layer_forward.1} parent=0 // loop_body
    %s16 = ssub.s32 %s11, 1
    %s17 = ssub.s32 %s11, 2
    %s18 = sadd.s32 %s11, 1
    %s20 = sadd.s32 %s19, 1
    %p23 = scmp.eq.s32.totalorder %s11, 1
    %p24 = scmp.ne.s32.totalorder %s19, %s21
    %p25 = scmp.eq.s32.totalorder %s11, 0
    %p26 = por %p24, %p25
    %p27 = scmp.ne.s32.totalorder %s19, %s21
    %p28 = scmp.eq.s32.totalorder %s16, 1
    %p29 = por %p27, %p28
    %p30 = scmp.ne.s32.totalorder %s21, %s22
    %p31 = scmp.eq.s32.totalorder %s16, 0
    %p32 = por %p30, %p31
    %p33 = scmp.ne.s32.totalorder %s21, %s22
    %p34 = scmp.eq.s32.totalorder %s17, 1
    %p35 = por %p33, %p34
    %p37 = scmp.ne.s32.totalorder %s22, %s36
    %p38 = scmp.eq.s32.totalorder %s17, 0
    %p39 = por %p37, %p38
    %s40 = ssub.s32 %s11, %s18
    %p41 = scmp.eq.s32.totalorder %s40, 0
    %s43 = sadd.s32 %s42, 1
    %s44 = scalar_select %p41, %s42, %s43
    %p47 = pneg %p41
    %p48 = scmp.eq.s32.totalorder %s11, 1
    %p49 = por %p47, %p48
    %p50 = scmp.ne.s32.totalorder %s42, %s45
    %p51 = scmp.eq.s32.totalorder %s11, 0
    %p52 = por %p50, %p51
    %p53 = scmp.ne.s32.totalorder %s42, %s45
    %p54 = scmp.eq.s32.totalorder %s16, 1
    %p55 = por %p53, %p54
    %p56 = scmp.ne.s32.totalorder %s45, %s46
    %p57 = scmp.eq.s32.totalorder %s16, 0
    %p58 = por %p56, %p57
    %p59 = scmp.ne.s32.totalorder %s45, %s46
    %p60 = scmp.eq.s32.totalorder %s17, 1
    %p61 = por %p59, %p60
    %p63 = scmp.ne.s32.totalorder %s46, %s62
    %p64 = scmp.eq.s32.totalorder %s17, 0
    %p65 = por %p63, %p64
    %s66 = ssub.s32 %s11, %s18
    %p67 = scmp.eq.s32.totalorder %s66, 0
    %s69 = sadd.s32 %s68, 1
    %s70 = scalar_select %p67, %s68, %s69
    %p73 = pneg %p67
    %p74 = scmp.eq.s32.totalorder %s11, 1
    %p75 = por %p73, %p74
    %p76 = scmp.ne.s32.totalorder %s68, %s71
    %p77 = scmp.eq.s32.totalorder %s11, 0
    %p78 = por %p76, %p77
    %p79 = scmp.ne.s32.totalorder %s68, %s71
    %p80 = scmp.eq.s32.totalorder %s16, 1
    %p81 = por %p79, %p80
    %p82 = scmp.ne.s32.totalorder %s71, %s72
    %p83 = scmp.eq.s32.totalorder %s16, 0
    %p84 = por %p82, %p83
    %p85 = scmp.ne.s32.totalorder %s71, %s72
    %p86 = scmp.eq.s32.totalorder %s17, 1
    %p87 = por %p85, %p86
    %p89 = scmp.ne.s32.totalorder %s72, %s88
    %p90 = scmp.eq.s32.totalorder %s17, 0
    %p91 = por %p89, %p90
    %s92 = ssub.s32 %s11, %s18
    %p93 = scmp.eq.s32.totalorder %s92, 0
    %s95 = sadd.s32 %s94, 1
    %s96 = scalar_select %p93, %s94, %s95
    %p99 = pneg %p93
    %p100 = scmp.eq.s32.totalorder %s11, 1
    %p101 = por %p99, %p100
    %p102 = scmp.ne.s32.totalorder %s94, %s97
    %p103 = scmp.eq.s32.totalorder %s11, 0
    %p104 = por %p102, %p103
    %p105 = scmp.ne.s32.totalorder %s94, %s97
    %p106 = scmp.eq.s32.totalorder %s16, 1
    %p107 = por %p105, %p106
    %p108 = scmp.ne.s32.totalorder %s97, %s98
    %p109 = scmp.eq.s32.totalorder %s16, 0
    %p110 = por %p108, %p109
    %p111 = scmp.ne.s32.totalorder %s97, %s98
    %p112 = scmp.eq.s32.totalorder %s17, 1
    %p113 = por %p111, %p112
    %p115 = scmp.ne.s32.totalorder %s98, %s114
    %p116 = scmp.eq.s32.totalorder %s17, 0
    %p117 = por %p115, %p116
    %s118 = ssub.s32 %s11, %s18
    %p119 = scmp.eq.s32.totalorder %s118, 0
    %s121 = sadd.s32 %s120, 1
    %s122 = scalar_select %p119, %s120, %s121
    %p125 = pneg %p119
    %p126 = scmp.eq.s32.totalorder %s11, 1
    %p127 = por %p125, %p126
    %p128 = scmp.ne.s32.totalorder %s120, %s123
    %p129 = scmp.eq.s32.totalorder %s11, 0
    %p130 = por %p128, %p129
    %p131 = scmp.ne.s32.totalorder %s120, %s123
    %p132 = scmp.eq.s32.totalorder %s16, 1
    %p133 = por %p131, %p132
    %p134 = scmp.ne.s32.totalorder %s123, %s124
    %p135 = scmp.eq.s32.totalorder %s16, 0
    %p136 = por %p134, %p135
    %p137 = scmp.ne.s32.totalorder %s123, %s124
    %p138 = scmp.eq.s32.totalorder %s17, 1
    %p139 = por %p137, %p138
    %p141 = scmp.ne.s32.totalorder %s124, %s140
    %p142 = scmp.eq.s32.totalorder %s17, 0
    %p143 = por %p141, %p142
    %s144 = ssub.s32 %s11, %s18
    %p145 = scmp.eq.s32.totalorder %s144, 0
    %s147 = sadd.s32 %s146, 1
    %s148 = scalar_select %p145, %s146, %s147
    %p151 = pneg %p145
    %p152 = scmp.eq.s32.totalorder %s11, 1
    %p153 = por %p151, %p152
    %p154 = scmp.ne.s32.totalorder %s146, %s149
    %p155 = scmp.eq.s32.totalorder %s11, 0
    %p156 = por %p154, %p155
    %p157 = scmp.ne.s32.totalorder %s146, %s149
    %p158 = scmp.eq.s32.totalorder %s16, 1
    %p159 = por %p157, %p158
    %p160 = scmp.ne.s32.totalorder %s149, %s150
    %p161 = scmp.eq.s32.totalorder %s16, 0
    %p162 = por %p160, %p161
    %p163 = scmp.ne.s32.totalorder %s149, %s150
    %p164 = scmp.eq.s32.totalorder %s17, 1
    %p165 = por %p163, %p164
    %p167 = scmp.ne.s32.totalorder %s150, %s166
    %p168 = scmp.eq.s32.totalorder %s17, 0
    %p169 = por %p167, %p168
    %p170 = scmp.le.s32.totalorder 1, %s11
    %p171 = scmp.lt.s32.totalorder %s11, 3
    %p172 = pnand %p170, %p171
    %p173 = pneg %p172
    // Predicated region
    $region9: #{layer_forward.1} parent=5 // pred_check
      _
    $region10: #{layer_forward.1} parent=5 // pred_check_branch
      %175 = sbr.rel (%p172) target = $region12
    $region11: #{layer_forward.1} parent=5 // pred_region
      %s176 = ssub.s32 %s11, 1
      // Predicated region
      $region13: #{layer_forward.1} parent=11 // pred_check
        %p177 = pneg %p32
      $region14: #{layer_forward.1} parent=11 // pred_check_branch
        %179 = sbr.rel (%p177) target = $region16
      $region15: #{layer_forward.1} parent=11 // pred_region
        _
      $region16: #{layer_forward.1} parent=11 // pred_fallthru
        _
    $region12: #{layer_forward.1} parent=5 // pred_fallthru
      _
    %p180 = scmp.lt.s32.totalorder %s11, 2
    // Predicated region
    $region17: #{layer_forward.1} parent=5 // pred_check
      %p181 = pneg %p180
    $region18: #{layer_forward.1} parent=5 // pred_check_branch
      %183 = sbr.rel (%p181) target = $region20
    $region19: #{layer_forward.1} parent=5 // pred_region
      // Predicated region
      $region21: #{layer_forward.1} parent=19 // pred_check
        %p184 = pneg %p52
      $region22: #{layer_forward.1} parent=19 // pred_check_branch
        %186 = sbr.rel (%p184) target = $region24
      $region23: #{layer_forward.1} parent=19 // pred_region
        %p187 = scmp.lt.s32.totalorder %s11, 1
        %s188 = scalar_select %p187, %s11, 1
        %s189 = smul.addr %s188, 8
        %s190 = scalar_lea.vmem %s1, %s189
      $region24: #{layer_forward.1} parent=19 // pred_fallthru
        _
      // Predicated region
      $region25: #{layer_forward.1} parent=19 // pred_check
        %p191 = pneg %p78
      $region26: #{layer_forward.1} parent=19 // pred_check_branch
        %193 = sbr.rel (%p191) target = $region28
      $region27: #{layer_forward.1} parent=19 // pred_region
        %p194 = scmp.lt.s32.totalorder %s11, 1
        %s195 = scalar_select %p194, %s11, 1
        %s196 = smul.addr %s195, 8
        %s197 = scalar_lea.vmem %s2, %s196
      $region28: #{layer_forward.1} parent=19 // pred_fallthru
        _
      // Predicated region
      $region29: #{layer_forward.1} parent=19 // pred_check
        %p198 = pneg %p104
      $region30: #{layer_forward.1} parent=19 // pred_check_branch
        %200 = sbr.rel (%p198) target = $region32
      $region31: #{layer_forward.1} parent=19 // pred_region
        %p201 = scmp.lt.s32.totalorder %s11, 1
        %s202 = scalar_select %p201, %s11, 1
        %s203 = smul.addr %s202, 8
        %s204 = scalar_lea.vmem %s3, %s203
      $region32: #{layer_forward.1} parent=19 // pred_fallthru
        _
      // Predicated region
      $region33: #{layer_forward.1} parent=19 // pred_check
        %p205 = pneg %p130
      $region34: #{layer_forward.1} parent=19 // pred_check_branch
        %207 = sbr.rel (%p205) target = $region36
      $region35: #{layer_forward.1} parent=19 // pred_region
        %p208 = scmp.lt.s32.totalorder %s11, 1
        %s209 = scalar_select %p208, %s11, 1
        %s210 = smul.addr %s209, 8
        %s211 = scalar_lea.vmem %s4, %s210
      $region36: #{layer_forward.1} parent=19 // pred_fallthru
        _
    $region20: #{layer_forward.1} parent=5 // pred_fallthru
      _
    %p212 = scmp.le.s32.totalorder 1, %s11
    %p213 = scmp.lt.s32.totalorder %s11, 3
    %p214 = pnand %p212, %p213
    %p215 = pneg %p214
    // Predicated region
    $region37: #{layer_forward.1} parent=5 // pred_check
      _
    $region38: #{layer_forward.1} parent=5 // pred_check_branch
      %217 = sbr.rel (%p214) target = $region40
    $region39: #{layer_forward.1} parent=5 // pred_region
      %s218 = ssub.s32 %s11, 1
      %p219 = pneg %p32
      %p220 = pneg %p29
      %p221 = scmp.lt.s32.totalorder %s16, 1
      %s222 = scalar_select %p221, %s16, 1
      %s223 = smul.addr %s222, 8
      %s224 = scalar_lea.vmem %s1, %s223
      %p225 = pneg %p58
      %p226 = pneg %p55
      %p227 = scmp.lt.s32.totalorder %s16, 1
      %s228 = scalar_select %p227, %s16, 1
      %s229 = smul.addr %s228, 8
      %s230 = scalar_lea.vmem %s2, %s229
      %p231 = pneg %p84
      %p232 = pneg %p81
      %p233 = scmp.lt.s32.totalorder %s16, 1
      %s234 = scalar_select %p233, %s16, 1
      %s235 = smul.addr %s234, 8
      %s236 = scalar_lea.vmem %s3, %s235
      %p237 = pneg %p110
      %p238 = pneg %p107
      %p239 = scmp.lt.s32.totalorder %s16, 1
      %s240 = scalar_select %p239, %s16, 1
      %s241 = smul.addr %s240, 8
      %s242 = scalar_lea.vmem %s4, %s241
      %p243 = pneg %p136
      %p244 = pneg %p133
      %p245 = pneg %p162
      %p246 = pneg %p159
      %p247 = scmp.lt.s32.totalorder %s16, 1
      %s248 = scalar_select %p247, %s16, 1
      %s249 = smul.addr %s248, 4
      %s250 = smul.addr %s249, 8
      %s251 = scalar_lea.vmem %s5, %s250
      %p252 = scmp.lt.s32.totalorder %s16, 1
      %s253 = scalar_select %p252, %s16, 1
      %s254 = smul.addr %s253, 8
      %s255 = scalar_lea.vmem %s1, %s254
      %p256 = scmp.lt.s32.totalorder %s16, 1
      %s257 = scalar_select %p256, %s16, 1
      %s258 = smul.addr %s257, 8
      %s259 = scalar_lea.vmem %s2, %s258
      %p260 = scmp.lt.s32.totalorder %s16, 1
      %s261 = scalar_select %p260, %s16, 1
      %s262 = smul.addr %s261, 8
      %s263 = scalar_lea.vmem %s3, %s262
      %p264 = scmp.lt.s32.totalorder %s16, 1
      %s265 = scalar_select %p264, %s16, 1
      %s266 = smul.addr %s265, 8
      %s267 = scalar_lea.vmem %s4, %s266
      %p268 = scmp.lt.s32.totalorder %s16, 1
      %s269 = scalar_select %p268, %s16, 1
      %s270 = smul.addr %s269, 4
      %s271 = smul.addr %s270, 8
      %s272 = scalar_lea.vmem %s5, %s271
      %p273 = scmp.eq.s32.totalorder %s16, 0
      // Predicated region
      $region41: #{layer_forward.1} parent=39 // pred_check
        %p274 = pneg %p273
      $region42: #{layer_forward.1} parent=39 // pred_check_branch
        %276 = sbr.rel (%p274) target = $region44
      $region43: #{layer_forward.1} parent=39 // pred_region
        %v277 = vld [vmem:[%s0] sm:$0xff]
        %v278 = vld [vmem:[%s0 + $0x8] sm:$0xff]
        %v279 = vld [vmem:[%s0 + $0x10] sm:$0xff]
        %v280 = vld [vmem:[%s0 + $0x18] sm:$0xff]
        %281 = vst [vmem:[#allocation2] sm:$0xff] %v277
        %282 = vst [vmem:[#allocation2 + $0x8] sm:$0xff] %v278
        %283 = vst [vmem:[#allocation2 + $0x10] sm:$0xff] %v279
        %284 = vst [vmem:[#allocation2 + $0x18] sm:$0xff] %v280
        %285 = vst [vmem:[#allocation3] sm:$0xff] 0.0
        %286 = vst [vmem:[#allocation3 + $0x20] sm:$0xff] 0.0
        %287 = vst [vmem:[#allocation3 + $0x18] sm:$0xff] 0.0
        %288 = vst [vmem:[#allocation3 + $0x38] sm:$0xff] 0.0
      $region44: #{layer_forward.1} parent=39 // pred_fallthru
        _
      %v289 = vlaneseq
      %v290 = vand.u32 %v289, 127
      %v291 = vadd.s32 %v290, 128
      %vm292 = vcmp.lt.s32.totalorder %v290, 0
      %v293 = vsub.s32 0, %v290
      %v294 = vsel %vm292, %v293, %v290
      %v295 = vshrl.u32 %v294, 4
      %v296 = vand.u32 %v294, 15
      %v297 = vsub.s32 0, %v296
      %v298 = vsel %vm292, %v297, %v296
      %vm299 = vcmp.lt.s32.totalorder %v291, 0
      %v300 = vsub.s32 0, %v291
      %v301 = vsel %vm299, %v300, %v291
      %v302 = vshrl.u32 %v301, 4
      %v303 = vand.u32 %v301, 15
      %v304 = vsub.s32 0, %v303
      %v305 = vsel %vm299, %v304, %v303
      %vm306 = vcmp.ne.s32.totalorder %v298, 0
      %vm307 = vcmp.ne.s32.totalorder %v305, 0
      %vm308 = vcmp.lt.s32.totalorder %v298, 0
      %vm309 = vcmp.lt.s32.totalorder %v305, 0
      %vm310 = vmand %vm308, %vm306
      %vm311 = vmand %vm309, %vm307
      %v312 = vadd.s32 %v298, 16
      %v313 = vadd.s32 %v305, 16
      %v314 = vsel %vm310, %v312, %v298
      %v315 = vsel %vm311, %v313, %v305
      %vm316 = vcmp.ge.s32.totalorder %v314, 1
      %vm317 = vcmp.ge.s32.totalorder %v315, 1
      %v318 = vsel %vm316, 1.0, 0.0
      %v319 = vsel %vm317, 1.0, 0.0
      %vm320 = vcmp.le.s32.totalorder %v314, 14
      %vm321 = vcmp.le.s32.totalorder %v315, 14
      %v322 = vsel %vm320, 1.0, 0.0
      %v323 = vsel %vm321, 1.0, 0.0
      %v324 = vld [vmem:[#allocation2] sm:$0xff]
      %v325 = vld [vmem:[#allocation2 + $0x8] sm:$0xff]
      %326 = vst [vmem:[#allocation3 + $0x8] sm:$0xff] %v324
      %327 = vst [vmem:[#allocation3 + $0x10] sm:$0xff] %v325
      %s328 = scalar_lea.vmem [#allocation2], 16
      %v329 = vld [vmem:[%s328] sm:$0xff]
      %v330 = vld [vmem:[%s328 + $0x8] sm:$0xff]
      %s331 = scalar_lea.vmem [#allocation3], 32
      %332 = vst [vmem:[%s331 + $0x8] sm:$0xff] %v329
      %333 = vst [vmem:[%s331 + $0x10] sm:$0xff] %v330
      %v334 = vld [vmem:[%s255] sm:$0xff]
      %v335 = vld [vmem:[%s259] sm:$0xff]
      %v336 = vld [vmem:[#allocation3] sm:$0xff]
      %v337 = vld [vmem:[#allocation3 + $0x8] sm:$0xff]
      %v338 = vld [vmem:[#allocation3 + $0x10] sm:$0xff]
      %341 = vrot.lane.b32.xlu0 %v318, 111
      %v342 = vpop.permute.xlu0 %341
      %343 = vrot.lane.b32.xlu0 %v319, 111
      %v344 = vpop.permute.xlu0 %343
      %vm345 = vcmask 908288
      %v346 = vsel %vm345, %v342, %v344
      %v350 = vmul.f32 %v336, %v342
      %v351 = vmul.f32 %v337, %v346
      %v352 = vmul.f32 %v338, %v344
      %356 = vrot.lane.b32.xlu0 %v350, 17
      %v357 = vpop.permute.xlu0 %356
      %358 = vrot.lane.b32.xlu0 %v351, 17
      %v359 = vpop.permute.xlu0 %358
      %360 = vrot.lane.b32.xlu0 %v352, 17
      %v361 = vpop.permute.xlu0 %360
      %vm362 = vcmask 138240
      %v363 = vsel %vm362, %v357, %v359
      %v364 = vsel %vm362, %v359, %v361
      %367 = vst [vmem:[#allocation4] sm:$0xff] %v363
      %368 = vst [vmem:[#allocation4 + $0x8] sm:$0xff] %v364
      %v369 = vld [vmem:[%s331] sm:$0xff]
      %v370 = vld [vmem:[%s331 + $0x8] sm:$0xff]
      %v371 = vld [vmem:[%s331 + $0x10] sm:$0xff]
      %v372 = vmul.f32 %v369, %v342
      %v373 = vmul.f32 %v370, %v346
      %v374 = vmul.f32 %v371, %v344
      %378 = vrot.lane.b32.xlu0 %v372, 17
      %v379 = vpop.permute.xlu0 %378
      %380 = vrot.lane.b32.xlu0 %v373, 17
      %v381 = vpop.permute.xlu0 %380
      %382 = vrot.lane.b32.xlu0 %v374, 17
      %v383 = vpop.permute.xlu0 %382
      %v384 = vsel %vm362, %v379, %v381
      %v385 = vsel %vm362, %v381, %v383
      %388 = vst [vmem:[#allocation4 + $0x10] sm:$0xff] %v384
      %389 = vst [vmem:[#allocation4 + $0x18] sm:$0xff] %v385
      %v390 = vld [vmem:[#allocation3] sm:$0xff]
      %v391 = vld [vmem:[#allocation3 + $0x8] sm:$0xff]
      %v392 = vld [vmem:[#allocation3 + $0x10] sm:$0xff]
      %396 = vrot.lane.b32.xlu0 %v390, 16
      %v397 = vpop.permute.xlu0 %396
      %398 = vrot.lane.b32.xlu0 %v391, 16
      %v399 = vpop.permute.xlu0 %398
      %400 = vrot.lane.b32.xlu0 %v392, 16
      %v401 = vpop.permute.xlu0 %400
      %vm402 = vcmask 130048
      %v403 = vsel %vm402, %v397, %v399
      %v404 = vsel %vm402, %v399, %v401
      %407 = vst [vmem:[#allocation4 + $0x20] sm:$0xff] %v403
      %408 = vst [vmem:[#allocation4 + $0x28] sm:$0xff] %v404
      %v409 = vld [vmem:[%s331] sm:$0xff]
      %v410 = vld [vmem:[%s331 + $0x8] sm:$0xff]
      %v411 = vld [vmem:[%s331 + $0x10] sm:$0xff]
      %415 = vrot.lane.b32.xlu0 %v409, 16
      %v416 = vpop.permute.xlu0 %415
      %417 = vrot.lane.b32.xlu0 %v410, 16
      %v418 = vpop.permute.xlu0 %417
      %419 = vrot.lane.b32.xlu0 %v411, 16
      %v420 = vpop.permute.xlu0 %419
      %v421 = vsel %vm402, %v416, %v418
      %v422 = vsel %vm402, %v418, %v420
      %425 = vst [vmem:[#allocation4 + $0x30] sm:$0xff] %v421
      %426 = vst [vmem:[#allocation4 + $0x38] sm:$0xff] %v422
      %v427 = vld [vmem:[#allocation3] sm:$0xff]
      %v428 = vld [vmem:[#allocation3 + $0x8] sm:$0xff]
      %v429 = vld [vmem:[#allocation3 + $0x10] sm:$0xff]
      %432 = vrot.lane.b32.xlu0 %v322, 113
      %v433 = vpop.permute.xlu0 %432
      %434 = vrot.lane.b32.xlu0 %v323, 113
      %v435 = vpop.permute.xlu0 %434
      %vm436 = vcmask 924672
      %v437 = vsel %vm436, %v433, %v435
      %v441 = vmul.f32 %v427, %v433
      %v442 = vmul.f32 %v428, %v437
      %v443 = vmul.f32 %v429, %v435
      %447 = vrot.lane.b32.xlu0 %v441, 15
      %v448 = vpop.permute.xlu0 %447
      %449 = vrot.lane.b32.xlu0 %v442, 15
      %v450 = vpop.permute.xlu0 %449
      %451 = vrot.lane.b32.xlu0 %v443, 15
      %v452 = vpop.permute.xlu0 %451
      %vm453 = vcmask 121856
      %v454 = vsel %vm453, %v448, %v450
      %v455 = vsel %vm453, %v450, %v452
      %458 = vst [vmem:[#allocation4 + $0x40] sm:$0xff] %v454
      %459 = vst [vmem:[#allocation4 + $0x48] sm:$0xff] %v455
      %v460 = vld [vmem:[%s331] sm:$0xff]
      %v461 = vld [vmem:[%s331 + $0x8] sm:$0xff]
      %v462 = vld [vmem:[%s331 + $0x10] sm:$0xff]
      %v463 = vmul.f32 %v460, %v433
      %v464 = vmul.f32 %v461, %v437
      %v465 = vmul.f32 %v462, %v435
      %469 = vrot.lane.b32.xlu0 %v463, 15
      %v470 = vpop.permute.xlu0 %469
      %471 = vrot.lane.b32.xlu0 %v464, 15
      %v472 = vpop.permute.xlu0 %471
      %473 = vrot.lane.b32.xlu0 %v465, 15
      %v474 = vpop.permute.xlu0 %473
      %v475 = vsel %vm453, %v470, %v472
      %v476 = vsel %vm453, %v472, %v474
      %479 = vst [vmem:[#allocation4 + $0x50] sm:$0xff] %v475
      %480 = vst [vmem:[#allocation4 + $0x58] sm:$0xff] %v476
      %v481 = vld [vmem:[#allocation3] sm:$0xff]
      %v482 = vld [vmem:[#allocation3 + $0x8] sm:$0xff]
      %v483 = vld [vmem:[#allocation3 + $0x10] sm:$0xff]
      %484 = vrot.lane.b32.xlu0 %v318, 127
      %v485 = vpop.permute.xlu0 %484
      %486 = vrot.lane.b32.xlu0 %v319, 127
      %v487 = vpop.permute.xlu0 %486
      %vm488 = vcmask 1039360
      %v489 = vsel %vm488, %v485, %v487
      %v493 = vmul.f32 %v481, %v485
      %v494 = vmul.f32 %v482, %v489
      %v495 = vmul.f32 %v483, %v487
      %499 = vrot.lane.b32.xlu0 %v493, 1
      %v500 = vpop.permute.xlu0 %499
      %501 = vrot.lane.b32.xlu0 %v494, 1
      %v502 = vpop.permute.xlu0 %501
      %503 = vrot.lane.b32.xlu0 %v495, 1
      %v504 = vpop.permute.xlu0 %503
      %vm505 = vcmask 7168
      %v506 = vsel %vm505, %v500, %v502
      %v507 = vsel %vm505, %v502, %v504
      %510 = vst [vmem:[#allocation4 + $0x60] sm:$0xff] %v506
      %511 = vst [vmem:[#allocation4 + $0x68] sm:$0xff] %v507
      %v512 = vld [vmem:[%s331] sm:$0xff]
      %v513 = vld [vmem:[%s331 + $0x8] sm:$0xff]
      %v514 = vld [vmem:[%s331 + $0x10] sm:$0xff]
      %v515 = vmul.f32 %v512, %v485
      %v516 = vmul.f32 %v513, %v489
      %v517 = vmul.f32 %v514, %v487
      %521 = vrot.lane.b32.xlu0 %v515, 1
      %v522 = vpop.permute.xlu0 %521
      %523 = vrot.lane.b32.xlu0 %v516, 1
      %v524 = vpop.permute.xlu0 %523
      %525 = vrot.lane.b32.xlu0 %v517, 1
      %v526 = vpop.permute.xlu0 %525
      %v527 = vsel %vm505, %v522, %v524
      %v528 = vsel %vm505, %v524, %v526
      %531 = vst [vmem:[#allocation4 + $0x70] sm:$0xff] %v527
      %532 = vst [vmem:[#allocation4 + $0x78] sm:$0xff] %v528
      %v533 = vld [vmem:[#allocation3 + $0x8] sm:$0xff]
      %v534 = vld [vmem:[#allocation3 + $0x10] sm:$0xff]
      %535 = vst [vmem:[#allocation4 + $0x80] sm:$0xff] %v533
      %536 = vst [vmem:[#allocation4 + $0x88] sm:$0xff] %v534
      %v537 = vld [vmem:[%s331 + $0x8] sm:$0xff]
      %v538 = vld [vmem:[%s331 + $0x10] sm:$0xff]
      %539 = vst [vmem:[#allocation4 + $0x90] sm:$0xff] %v537
      %540 = vst [vmem:[#allocation4 + $0x98] sm:$0xff] %v538
      %v541 = vld [vmem:[#allocation3 + $0x8] sm:$0xff]
      %v542 = vld [vmem:[#allocation3 + $0x10] sm:$0xff]
      %v543 = vld [vmem:[#allocation3 + $0x18] sm:$0xff]
      %544 = vrot.lane.b32.xlu0 %v322, 1
      %v545 = vpop.permute.xlu0 %544
      %546 = vrot.lane.b32.xlu0 %v323, 1
      %v547 = vpop.permute.xlu0 %546
      %v548 = vsel %vm505, %v545, %v547
      %v552 = vmul.f32 %v541, %v545
      %v553 = vmul.f32 %v542, %v548
      %v554 = vmul.f32 %v543, %v547
      %558 = vrot.lane.b32.xlu0 %v552, 127
      %v559 = vpop.permute.xlu0 %558
      %560 = vrot.lane.b32.xlu0 %v553, 127
      %v561 = vpop.permute.xlu0 %560
      %562 = vrot.lane.b32.xlu0 %v554, 127
      %v563 = vpop.permute.xlu0 %562
      %v564 = vsel %vm488, %v559, %v561
      %v565 = vsel %vm488, %v561, %v563
      %568 = vst [vmem:[#allocation4 + $0xa0] sm:$0xff] %v564
      %569 = vst [vmem:[#allocation4 + $0xa8] sm:$0xff] %v565
      %v570 = vld [vmem:[%s331 + $0x8] sm:$0xff]
      %v571 = vld [vmem:[%s331 + $0x10] sm:$0xff]
      %v572 = vld [vmem:[%s331 + $0x18] sm:$0xff]
      %v573 = vmul.f32 %v570, %v545
      %v574 = vmul.f32 %v571, %v548
      %v575 = vmul.f32 %v572, %v547
      %579 = vrot.lane.b32.xlu0 %v573, 127
      %v580 = vpop.permute.xlu0 %579
      %581 = vrot.lane.b32.xlu0 %v574, 127
      %v582 = vpop.permute.xlu0 %581
      %583 = vrot.lane.b32.xlu0 %v575, 127
      %v584 = vpop.permute.xlu0 %583
      %v585 = vsel %vm488, %v580, %v582
      %v586 = vsel %vm488, %v582, %v584
      %589 = vst [vmem:[#allocation4 + $0xb0] sm:$0xff] %v585
      %590 = vst [vmem:[#allocation4 + $0xb8] sm:$0xff] %v586
      %v591 = vld [vmem:[#allocation3 + $0x8] sm:$0xff]
      %v592 = vld [vmem:[#allocation3 + $0x10] sm:$0xff]
      %v593 = vld [vmem:[#allocation3 + $0x18] sm:$0xff]
      %594 = vrot.lane.b32.xlu0 %v318, 15
      %v595 = vpop.permute.xlu0 %594
      %596 = vrot.lane.b32.xlu0 %v319, 15
      %v597 = vpop.permute.xlu0 %596
      %v598 = vsel %vm453, %v595, %v597
      %v602 = vmul.f32 %v591, %v595
      %v603 = vmul.f32 %v592, %v598
      %v604 = vmul.f32 %v593, %v597
      %608 = vrot.lane.b32.xlu0 %v602, 113
      %v609 = vpop.permute.xlu0 %608
      %610 = vrot.lane.b32.xlu0 %v603, 113
      %v611 = vpop.permute.xlu0 %610
      %612 = vrot.lane.b32.xlu0 %v604, 113
      %v613 = vpop.permute.xlu0 %612
      %v614 = vsel %vm436, %v609, %v611
      %v615 = vsel %vm436, %v611, %v613
      %618 = vst [vmem:[#allocation4 + $0xc0] sm:$0xff] %v614
      %619 = vst [vmem:[#allocation4 + $0xc8] sm:$0xff] %v615
      %v620 = vld [vmem:[%s331 + $0x8] sm:$0xff]
      %v621 = vld [vmem:[%s331 + $0x10] sm:$0xff]
      %v622 = vld [vmem:[%s331 + $0x18] sm:$0xff]
      %v623 = vmul.f32 %v620, %v595
      %v624 = vmul.f32 %v621, %v598
      %v625 = vmul.f32 %v622, %v597
      %629 = vrot.lane.b32.xlu0 %v623, 113
      %v630 = vpop.permute.xlu0 %629
      %631 = vrot.lane.b32.xlu0 %v624, 113
      %v632 = vpop.permute.xlu0 %631
      %633 = vrot.lane.b32.xlu0 %v625, 113
      %v634 = vpop.permute.xlu0 %633
      %v635 = vsel %vm436, %v630, %v632
      %v636 = vsel %vm436, %v632, %v634
      %639 = vst [vmem:[#allocation4 + $0xd0] sm:$0xff] %v635
      %640 = vst [vmem:[#allocation4 + $0xd8] sm:$0xff] %v636
      %v641 = vld [vmem:[#allocation3 + $0x8] sm:$0xff]
      %v642 = vld [vmem:[#allocation3 + $0x10] sm:$0xff]
      %v643 = vld [vmem:[#allocation3 + $0x18] sm:$0xff]
      %647 = vrot.lane.b32.xlu0 %v641, 112
      %v648 = vpop.permute.xlu0 %647
      %649 = vrot.lane.b32.xlu0 %v642, 112
      %v650 = vpop.permute.xlu0 %649
      %651 = vrot.lane.b32.xlu0 %v643, 112
      %v652 = vpop.permute.xlu0 %651
      %vm653 = vcmask 916480
      %v654 = vsel %vm653, %v648, %v650
      %v655 = vsel %vm653, %v650, %v652
      %658 = vst [vmem:[#allocation4 + $0xe0] sm:$0xff] %v654
      %659 = vst [vmem:[#allocation4 + $0xe8] sm:$0xff] %v655
      %v660 = vld [vmem:[%s331 + $0x8] sm:$0xff]
      %v661 = vld [vmem:[%s331 + $0x10] sm:$0xff]
      %v662 = vld [vmem:[%s331 + $0x18] sm:$0xff]
      %666 = vrot.lane.b32.xlu0 %v660, 112
      %v667 = vpop.permute.xlu0 %666
      %668 = vrot.lane.b32.xlu0 %v661, 112
      %v669 = vpop.permute.xlu0 %668
      %670 = vrot.lane.b32.xlu0 %v662, 112
      %v671 = vpop.permute.xlu0 %670
      %v672 = vsel %vm653, %v667, %v669
      %v673 = vsel %vm653, %v669, %v671
      %676 = vst [vmem:[#allocation4 + $0xf0] sm:$0xff] %v672
      %677 = vst [vmem:[#allocation4 + $0xf8] sm:$0xff] %v673
      %v678 = vld [vmem:[#allocation3 + $0x8] sm:$0xff]
      %v679 = vld [vmem:[#allocation3 + $0x10] sm:$0xff]
      %v680 = vld [vmem:[#allocation3 + $0x18] sm:$0xff]
      %681 = vrot.lane.b32.xlu0 %v322, 17
      %v682 = vpop.permute.xlu0 %681
      %683 = vrot.lane.b32.xlu0 %v323, 17
      %v684 = vpop.permute.xlu0 %683
      %v685 = vsel %vm362, %v682, %v684
      %v689 = vmul.f32 %v678, %v682
      %v690 = vmul.f32 %v679, %v685
      %v691 = vmul.f32 %v680, %v684
      %695 = vrot.lane.b32.xlu0 %v689, 111
      %v696 = vpop.permute.xlu0 %695
      %697 = vrot.lane.b32.xlu0 %v690, 111
      %v698 = vpop.permute.xlu0 %697
      %699 = vrot.lane.b32.xlu0 %v691, 111
      %v700 = vpop.permute.xlu0 %699
      %v701 = vsel %vm345, %v696, %v698
      %v702 = vsel %vm345, %v698, %v700
      %705 = vst [vmem:[#allocation4 + $0x100] sm:$0xff] %v701
      %706 = vst [vmem:[#allocation4 + $0x108] sm:$0xff] %v702
      %v707 = vld [vmem:[%s331 + $0x8] sm:$0xff]
      %v708 = vld [vmem:[%s331 + $0x10] sm:$0xff]
      %v709 = vld [vmem:[%s331 + $0x18] sm:$0xff]
      %v710 = vmul.f32 %v707, %v682
      %v711 = vmul.f32 %v708, %v685
      %v712 = vmul.f32 %v709, %v684
      %716 = vrot.lane.b32.xlu0 %v710, 111
      %v717 = vpop.permute.xlu0 %716
      %718 = vrot.lane.b32.xlu0 %v711, 111
      %v719 = vpop.permute.xlu0 %718
      %720 = vrot.lane.b32.xlu0 %v712, 111
      %v721 = vpop.permute.xlu0 %720
      %v722 = vsel %vm345, %v717, %v719
      %v723 = vsel %vm345, %v719, %v721
      %726 = vst [vmem:[#allocation4 + $0x110] sm:$0xff] %v722
      %727 = vst [vmem:[#allocation4 + $0x118] sm:$0xff] %v723
      %v728 = vld [vmem:[#allocation4] sm:$0xff]
      %v729 = vld [vmem:[#allocation4 + $0x8] sm:$0xff]
      %v730 = vld [vmem:[#allocation4 + $0x10] sm:$0xff]
      %v731 = vld [vmem:[#allocation4 + $0x18] sm:$0xff]
      %v732 = vld [vmem:[#allocation4 + $0x20] sm:$0xff]
      %v733 = vld [vmem:[#allocation4 + $0x28] sm:$0xff]
      %v734 = vld [vmem:[#allocation4 + $0x30] sm:$0xff]
      %v735 = vld [vmem:[#allocation4 + $0x38] sm:$0xff]
      %v736 = vld [vmem:[#allocation4 + $0x40] sm:$0xff]
      %v737 = vld [vmem:[#allocation4 + $0x48] sm:$0xff]
      %v738 = vld [vmem:[#allocation4 + $0x50] sm:$0xff]
      %v739 = vld [vmem:[#allocation4 + $0x58] sm:$0xff]
      %v740 = vld [vmem:[#allocation4 + $0x60] sm:$0xff]
      %v741 = vld [vmem:[#allocation4 + $0x68] sm:$0xff]
      %v742 = vld [vmem:[#allocation4 + $0x70] sm:$0xff]
      %v743 = vld [vmem:[#allocation4 + $0x78] sm:$0xff]
      %v744 = vld [vmem:[#allocation4 + $0x80] sm:$0xff]
      %v745 = vld [vmem:[#allocation4 + $0x88] sm:$0xff]
      %v746 = vld [vmem:[#allocation4 + $0x90] sm:$0xff]
      %v747 = vld [vmem:[#allocation4 + $0x98] sm:$0xff]
      %v748 = vld [vmem:[#allocation4 + $0xa0] sm:$0xff]
      %v749 = vld [vmem:[#allocation4 + $0xa8] sm:$0xff]
      %v750 = vld [vmem:[#allocation4 + $0xb0] sm:$0xff]
      %v751 = vld [vmem:[#allocation4 + $0xb8] sm:$0xff]
      %v752 = vld [vmem:[#allocation4 + $0xc0] sm:$0xff]
      %v753 = vld [vmem:[#allocation4 + $0xc8] sm:$0xff]
      %v754 = vld [vmem:[#allocation4 + $0xd0] sm:$0xff]
      %v755 = vld [vmem:[#allocation4 + $0xd8] sm:$0xff]
      %v756 = vld [vmem:[#allocation4 + $0xe0] sm:$0xff]
      %v757 = vld [vmem:[#allocation4 + $0xe8] sm:$0xff]
      %v758 = vld [vmem:[#allocation4 + $0xf0] sm:$0xff]
      %v759 = vld [vmem:[#allocation4 + $0xf8] sm:$0xff]
      %v760 = vld [vmem:[#allocation4 + $0x100] sm:$0xff]
      %v761 = vld [vmem:[#allocation4 + $0x108] sm:$0xff]
      %v762 = vld [vmem:[#allocation4 + $0x110] sm:$0xff]
      %v763 = vld [vmem:[#allocation4 + $0x118] sm:$0xff]
      %vm764 = vcmask 588800
      %v766 = vsel %vm764, %v334, 0
      %768 = vmatprep.subr.mxu0 %v729
      %769 = vmatpush1.msra.mxu0 %v728
      %770 = vmatprep.subr.mxu0 %v733
      %771 = vmatpush1.msra.mxu0 %v732
      %772 = vmatprep.subr.mxu0 %v737
      %773 = vmatpush1.msra.mxu0 %v736
      %774 = vmatprep.subr.mxu0 %v741
      %775 = vmatpush1.msra.mxu0 %v740
      %776 = vmatprep.subr.mxu0 %v745
      %777 = vmatpush1.msra.mxu0 %v744
      %778 = vmatprep.subr.mxu0 %v749
      %779 = vmatpush1.msra.mxu0 %v748
      %780 = vmatprep.subr.mxu0 %v753
      %781 = vmatpush1.msra.mxu0 %v752
      %782 = vmatprep.subr.mxu0 %v757
      %783 = vmatpush1.msra.mxu0 %v756
      %784 = vmatprep.subr.mxu0 %v761
      %785 = vmatpush1.msra.mxu0 %v760
      %786 = vmatprep.subr.mxu0 0.0
      %787 = vmatpush1.msra.mxu0 0.0
      %788 = vmatprep.subr.mxu0 0.0
      %789 = vmatpush1.msra.mxu0 0.0
      %790 = vmatprep.subr.mxu0 0.0
      %791 = vmatpush1.msra.mxu0 0.0
      %792 = vmatprep.subr.mxu0 0.0
      %793 = vmatpush1.msra.mxu0 0.0
      %794 = vmatprep.subr.mxu0 0.0
      %795 = vmatpush1.msra.mxu0 0.0
      %796 = vmatprep.subr.mxu0 0.0
      %797 = vmatpush1.msra.mxu0 0.0
      %798 = vmatprep.subr.mxu0 0.0
      %799 = vmatpush1.msra.mxu0 0.0
      %800 = vmatprep.subr.mxu0 0.0
      %801 = vmatpush1.msra.mxu0 0.0
      %802 = vmatprep.subr.mxu0 0.0
      %803 = vmatpush1.msra.mxu0 0.0
      %804 = vmatprep.subr.mxu0 0.0
      %805 = vmatpush1.msra.mxu0 0.0
      %806 = vmatprep.subr.mxu0 0.0
      %807 = vmatpush1.msra.mxu0 0.0
      %808 = vmatprep.subr.mxu0 0.0
      %809 = vmatpush1.msra.mxu0 0.0
      %810 = vmatprep.subr.mxu0 0.0
      %811 = vmatpush1.msra.mxu0 0.0
      %812 = vmatprep.subr.mxu0 0.0
      %813 = vmatpush1.msra.mxu0 0.0
      %814 = vmatprep.subr.mxu0 0.0
      %815 = vmatpush1.msra.mxu0 0.0
      %816 = vmatprep.subr.mxu0 0.0
      %817 = vmatpush1.msra.mxu0 0.0
      %818 = vmatprep.subr.mxu0 0.0
      %819 = vmatpush1.msra.mxu0 0.0
      %820 = vmatprep.subr.mxu0 0.0
      %821 = vmatpush1.msra.mxu0 0.0
      %822 = vmatprep.subr.mxu0 0.0
      %823 = vmatpush1.msra.mxu0 0.0
      %824 = vmatprep.subr.mxu0 0.0
      %825 = vmatpush1.msra.mxu0 0.0
      %826 = vmatprep.subr.mxu0 0.0
      %827 = vmatpush1.msra.mxu0 0.0
      %828 = vmatprep.subr.mxu0 0.0
      %829 = vmatpush1.msra.mxu0 0.0
      %830 = vmatprep.subr.mxu0 0.0
      %831 = vmatpush1.msra.mxu0 0.0
      %832 = vmatprep.mubr.f32.mxu0 0.0
      %833 = vmatmul.mubr.f32.gmra.mrb[0].mxu0 %v766
      %v834 = vpop.f32.mrb[0].mxu0
      %v835 = vadd.f32 0.0, %v834
      %v836 = vpop.f32.mrb[0].mxu0
      %v837 = vadd.f32 0.0, %v836
      %838 = vdwg.mxu0
      %839 = vmatprep.subr.mxu0 %v731
      %840 = vmatpush1.msra.mxu0 %v730
      %841 = vmatprep.subr.mxu0 %v735
      %842 = vmatpush1.msra.mxu0 %v734
      %843 = vmatprep.subr.mxu0 %v739
      %844 = vmatpush1.msra.mxu0 %v738
      %845 = vmatprep.subr.mxu0 %v743
      %846 = vmatpush1.msra.mxu0 %v742
      %847 = vmatprep.subr.mxu0 %v747
      %848 = vmatpush1.msra.mxu0 %v746
      %849 = vmatprep.subr.mxu0 %v751
      %850 = vmatpush1.msra.mxu0 %v750
      %851 = vmatprep.subr.mxu0 %v755
      %852 = vmatpush1.msra.mxu0 %v754
      %853 = vmatprep.subr.mxu0 %v759
      %854 = vmatpush1.msra.mxu0 %v758
      %855 = vmatprep.subr.mxu0 %v763
      %856 = vmatpush1.msra.mxu0 %v762
      %857 = vmatprep.subr.mxu0 0.0
      %858 = vmatpush1.msra.mxu0 0.0
      %859 = vmatprep.subr.mxu0 0.0
      %860 = vmatpush1.msra.mxu0 0.0
      %861 = vmatprep.subr.mxu0 0.0
      %862 = vmatpush1.msra.mxu0 0.0
      %863 = vmatprep.subr.mxu0 0.0
      %864 = vmatpush1.msra.mxu0 0.0
      %865 = vmatprep.subr.mxu0 0.0
      %866 = vmatpush1.msra.mxu0 0.0
      %867 = vmatprep.subr.mxu0 0.0
      %868 = vmatpush1.msra.mxu0 0.0
      %869 = vmatprep.subr.mxu0 0.0
      %870 = vmatpush1.msra.mxu0 0.0
      %871 = vmatprep.subr.mxu0 0.0
      %872 = vmatpush1.msra.mxu0 0.0
      %873 = vmatprep.subr.mxu0 0.0
      %874 = vmatpush1.msra.mxu0 0.0
      %875 = vmatprep.subr.mxu0 0.0
      %876 = vmatpush1.msra.mxu0 0.0
      %877 = vmatprep.subr.mxu0 0.0
      %878 = vmatpush1.msra.mxu0 0.0
      %879 = vmatprep.subr.mxu0 0.0
      %880 = vmatpush1.msra.mxu0 0.0
      %881 = vmatprep.subr.mxu0 0.0
      %882 = vmatpush1.msra.mxu0 0.0
      %883 = vmatprep.subr.mxu0 0.0
      %884 = vmatpush1.msra.mxu0 0.0
      %885 = vmatprep.subr.mxu0 0.0
      %886 = vmatpush1.msra.mxu0 0.0
      %887 = vmatprep.subr.mxu0 0.0
      %888 = vmatpush1.msra.mxu0 0.0
      %889 = vmatprep.subr.mxu0 0.0
      %890 = vmatpush1.msra.mxu0 0.0
      %891 = vmatprep.subr.mxu0 0.0
      %892 = vmatpush1.msra.mxu0 0.0
      %893 = vmatprep.subr.mxu0 0.0
      %894 = vmatpush1.msra.mxu0 0.0
      %895 = vmatprep.subr.mxu0 0.0
      %896 = vmatpush1.msra.mxu0 0.0
      %897 = vmatprep.subr.mxu0 0.0
      %898 = vmatpush1.msra.mxu0 0.0
      %899 = vmatprep.subr.mxu0 0.0
      %900 = vmatpush1.msra.mxu0 0.0
      %901 = vmatprep.subr.mxu0 0.0
      %902 = vmatpush1.msra.mxu0 0.0
      %903 = vmatprep.mubr.f32.mxu0 0.0
      %904 = vmatmul.mubr.f32.gmra.mrb[0].mxu0 %v766
      %v905 = vpop.f32.mrb[0].mxu0
      %v906 = vadd.f32 0.0, %v905
      %v907 = vpop.f32.mrb[0].mxu0
      %v908 = vadd.f32 0.0, %v907
      %909 = vdwg.mxu0
      %v910 = vmul.f32 %v728, %v728
      %v911 = vmul.f32 %v729, %v729
      %v912 = vmul.f32 %v730, %v730
      %v913 = vmul.f32 %v731, %v731
      %v914 = vmul.f32 %v732, %v732
      %v915 = vmul.f32 %v733, %v733
      %v916 = vmul.f32 %v734, %v734
      %v917 = vmul.f32 %v735, %v735
      %v918 = vmul.f32 %v736, %v736
      %v919 = vmul.f32 %v737, %v737
      %v920 = vmul.f32 %v738, %v738
      %v921 = vmul.f32 %v739, %v739
      %v922 = vmul.f32 %v740, %v740
      %v923 = vmul.f32 %v741, %v741
      %v924 = vmul.f32 %v742, %v742
      %v925 = vmul.f32 %v743, %v743
      %v926 = vmul.f32 %v744, %v744
      %v927 = vmul.f32 %v745, %v745
      %v928 = vmul.f32 %v746, %v746
      %v929 = vmul.f32 %v747, %v747
      %v930 = vmul.f32 %v748, %v748
      %v931 = vmul.f32 %v749, %v749
      %v932 = vmul.f32 %v750, %v750
      %v933 = vmul.f32 %v751, %v751
      %v934 = vmul.f32 %v752, %v752
      %v935 = vmul.f32 %v753, %v753
      %v936 = vmul.f32 %v754, %v754
      %v937 = vmul.f32 %v755, %v755
      %v938 = vmul.f32 %v756, %v756
      %v939 = vmul.f32 %v757, %v757
      %v940 = vmul.f32 %v758, %v758
      %v941 = vmul.f32 %v759, %v759
      %v942 = vmul.f32 %v760, %v760
      %v943 = vmul.f32 %v761, %v761
      %v944 = vmul.f32 %v762, %v762
      %v945 = vmul.f32 %v763, %v763
      %v946 = vadd.f32 %v910, %v914
      %v947 = vadd.f32 %v946, %v918
      %v948 = vadd.f32 %v947, %v922
      %v949 = vadd.f32 %v948, %v926
      %v950 = vadd.f32 %v949, %v930
      %v951 = vadd.f32 %v950, %v934
      %v952 = vadd.f32 %v951, %v938
      %v953 = vadd.f32 %v952, %v942
      %v954 = vrot.slane %v953, 4
      %v955 = vadd.f32 %v953, %v954
      %v956 = vrot.slane %v955, 2
      %v957 = vadd.f32 %v955, %v956
      %v958 = vrot.slane %v957, 1
      %v959 = vadd.f32 %v957, %v958
      %v960 = vadd.f32 %v911, %v915
      %v961 = vadd.f32 %v960, %v919
      %v962 = vadd.f32 %v961, %v923
      %v963 = vadd.f32 %v962, %v927
      %v964 = vadd.f32 %v963, %v931
      %v965 = vadd.f32 %v964, %v935
      %v966 = vadd.f32 %v965, %v939
      %v967 = vadd.f32 %v966, %v943
      %v968 = vrot.slane %v967, 4
      %v969 = vadd.f32 %v967, %v968
      %v970 = vrot.slane %v969, 2
      %v971 = vadd.f32 %v969, %v970
      %v972 = vrot.slane %v971, 1
      %v973 = vadd.f32 %v971, %v972
      %v974 = vadd.f32 %v912, %v916
      %v975 = vadd.f32 %v974, %v920
      %v976 = vadd.f32 %v975, %v924
      %v977 = vadd.f32 %v976, %v928
      %v978 = vadd.f32 %v977, %v932
      %v979 = vadd.f32 %v978, %v936
      %v980 = vadd.f32 %v979, %v940
      %v981 = vadd.f32 %v980, %v944
      %v982 = vrot.slane %v981, 4
      %v983 = vadd.f32 %v981, %v982
      %v984 = vrot.slane %v983, 2
      %v985 = vadd.f32 %v983, %v984
      %v986 = vrot.slane %v985, 1
      %v987 = vadd.f32 %v985, %v986
      %v988 = vadd.f32 %v913, %v917
      %v989 = vadd.f32 %v988, %v921
      %v990 = vadd.f32 %v989, %v925
      %v991 = vadd.f32 %v990, %v929
      %v992 = vadd.f32 %v991, %v933
      %v993 = vadd.f32 %v992, %v937
      %v994 = vadd.f32 %v993, %v941
      %v995 = vadd.f32 %v994, %v945
      %v996 = vrot.slane %v995, 4
      %v997 = vadd.f32 %v995, %v996
      %v998 = vrot.slane %v997, 2
      %v999 = vadd.f32 %v997, %v998
      %v1000 = vrot.slane %v999, 1
      %v1001 = vadd.f32 %v999, %v1000
      %v1002 = vadd.f32 %v959, 1e-06
      %v1003 = vadd.f32 %v973, 1e-06
      %v1004 = vadd.f32 %v987, 1e-06
      %v1005 = vadd.f32 %v1001, 1e-06
      %v1006 = vrsqrt.pop %v1002
      %v1007 = vrsqrt.pop %v1003
      %v1008 = vrsqrt.pop %v1004
      %v1009 = vrsqrt.pop %v1005
      %v1010 = vand.u32 2147483647, %v835
      %v1011 = vand.u32 2147483647, %v837
      %v1012 = vand.u32 2147483647, %v906
      %v1013 = vand.u32 2147483647, %v908
      %v1014 = vmul.f32 %v1010, %v1006
      %v1015 = vmul.f32 %v1011, %v1007
      %v1016 = vmul.f32 %v1012, %v1008
      %v1017 = vmul.f32 %v1013, %v1009
      %v1018 = vmul.f32 %v1014, %v835
      %v1019 = vmul.f32 %v1015, %v837
      %v1020 = vmul.f32 %v1016, %v906
      %v1021 = vmul.f32 %v1017, %v908
      %v1022 = vadd.f32 %v1018, %v1019
      %v1023 = vadd.f32 %v1022, %v1020
      %v1024 = vadd.f32 %v1023, %v1021
      %1025 = vadd.xlane.f32.xlu0 %v1024
      %v1026 = vpop.xlane.xlu0 %1025
      %v1027 = vmul.f32 %v1026, 0.001953125
      %v1028 = vmul.f32 %v1018, %v1018
      %v1029 = vmul.f32 %v1019, %v1019
      %v1030 = vmul.f32 %v1020, %v1020
      %v1031 = vmul.f32 %v1021, %v1021
      %v1032 = vadd.f32 %v1028, %v1029
      %v1033 = vadd.f32 %v1032, %v1030
      %v1034 = vadd.f32 %v1033, %v1031
      %1035 = vadd.xlane.f32.xlu0 %v1034
      %v1036 = vpop.xlane.xlu0 %1035
      %v1037 = vmul.f32 %v1036, 0.001953125
      %v1038 = vmul.f32 %v1027, %v1027
      %v1039 = vsub.f32 %v1037, %v1038
      %v1040 = vadd.f32 %v1039, 1e-05
      %v1041 = vrsqrt.pop %v1040
      %v1042 = vmul.f32 %v1041, %v335
      %1044 = vset.pattern.permute.xlu0 0
      %1045 = vperm.xlu0 %1044, %v1042
      %v1046 = vpop.permute.xlu0 %1045
      %v1048 = vmul.f32 %v1018, %v1046
      %v1049 = vmul.f32 %v1019, %v1046
      %v1050 = vmul.f32 %v1020, %v1046
      %v1051 = vmul.f32 %v1021, %v1046
      %1052 = vst [vmem:[#allocation3 + $0x8] sm:$0xff] %v1048
      %1053 = vst [vmem:[#allocation3 + $0x10] sm:$0xff] %v1049
      %1054 = vst [vmem:[%s331 + $0x8] sm:$0xff] %v1050
      %1055 = vst [vmem:[%s331 + $0x10] sm:$0xff] %v1051
      %v1056 = vld [vmem:[%s263] sm:$0xff]
      %v1057 = vld [vmem:[%s267] sm:$0xff]
      %v1058 = vld [vmem:[#allocation3] sm:$0xff]
      %v1059 = vld [vmem:[#allocation3 + $0x8] sm:$0xff]
      %v1060 = vld [vmem:[#allocation3 + $0x10] sm:$0xff]
      %v1061 = vmul.f32 %v1058, %v342
      %v1062 = vmul.f32 %v1059, %v346
      %v1063 = vmul.f32 %v1060, %v344
      %1067 = vrot.lane.b32.xlu0 %v1061, 17
      %v1068 = vpop.permute.xlu0 %1067
      %1069 = vrot.lane.b32.xlu0 %v1062, 17
      %v1070 = vpop.permute.xlu0 %1069
      %1071 = vrot.lane.b32.xlu0 %v1063, 17
      %v1072 = vpop.permute.xlu0 %1071
      %v1073 = vsel %vm362, %v1068, %v1070
      %v1074 = vsel %vm362, %v1070, %v1072
      %1077 = vst [vmem:[#allocation4] sm:$0xff] %v1073
      %1078 = vst [vmem:[#allocation4 + $0x8] sm:$0xff] %v1074
      %v1079 = vld [vmem:[%s331] sm:$0xff]
      %v1080 = vld [vmem:[%s331 + $0x8] sm:$0xff]
      %v1081 = vld [vmem:[%s331 + $0x10] sm:$0xff]
      %v1082 = vmul.f32 %v1079, %v342
      %v1083 = vmul.f32 %v1080, %v346
      %v1084 = vmul.f32 %v1081, %v344
      %1088 = vrot.lane.b32.xlu0 %v1082, 17
      %v1089 = vpop.permute.xlu0 %1088
      %1090 = vrot.lane.b32.xlu0 %v1083, 17
      %v1091 = vpop.permute.xlu0 %1090
      %1092 = vrot.lane.b32.xlu0 %v1084, 17
      %v1093 = vpop.permute.xlu0 %1092
      %v1094 = vsel %vm362, %v1089, %v1091
      %v1095 = vsel %vm362, %v1091, %v1093
      %1098 = vst [vmem:[#allocation4 + $0x10] sm:$0xff] %v1094
      %1099 = vst [vmem:[#allocation4 + $0x18] sm:$0xff] %v1095
      %v1100 = vld [vmem:[#allocation3] sm:$0xff]
      %v1101 = vld [vmem:[#allocation3 + $0x8] sm:$0xff]
      %v1102 = vld [vmem:[#allocation3 + $0x10] sm:$0xff]
      %1106 = vrot.lane.b32.xlu0 %v1100, 16
      %v1107 = vpop.permute.xlu0 %1106
      %1108 = vrot.lane.b32.xlu0 %v1101, 16
      %v1109 = vpop.permute.xlu0 %1108
      %1110 = vrot.lane.b32.xlu0 %v1102, 16
      %v1111 = vpop.permute.xlu0 %1110
      %v1112 = vsel %vm402, %v1107, %v1109
      %v1113 = vsel %vm402, %v1109, %v1111
      %1116 = vst [vmem:[#allocation4 + $0x20] sm:$0xff] %v1112
      %1117 = vst [vmem:[#allocation4 + $0x28] sm:$0xff] %v1113
      %v1118 = vld [vmem:[%s331] sm:$0xff]
      %v1119 = vld [vmem:[%s331 + $0x8] sm:$0xff]
      %v1120 = vld [vmem:[%s331 + $0x10] sm:$0xff]
      %1124 = vrot.lane.b32.xlu0 %v1118, 16
      %v1125 = vpop.permute.xlu0 %1124
      %1126 = vrot.lane.b32.xlu0 %v1119, 16
      %v1127 = vpop.permute.xlu0 %1126
      %1128 = vrot.lane.b32.xlu0 %v1120, 16
      %v1129 = vpop.permute.xlu0 %1128
      %v1130 = vsel %vm402, %v1125, %v1127
      %v1131 = vsel %vm402, %v1127, %v1129
      %1134 = vst [vmem:[#allocation4 + $0x30] sm:$0xff] %v1130
      %1135 = vst [vmem:[#allocation4 + $0x38] sm:$0xff] %v1131
      %v1136 = vld [vmem:[#allocation3] sm:$0xff]
      %v1137 = vld [vmem:[#allocation3 + $0x8] sm:$0xff]
      %v1138 = vld [vmem:[#allocation3 + $0x10] sm:$0xff]
      %v1139 = vmul.f32 %v1136, %v433
      %v1140 = vmul.f32 %v1137, %v437
      %v1141 = vmul.f32 %v1138, %v435
      %1145 = vrot.lane.b32.xlu0 %v1139, 15
      %v1146 = vpop.permute.xlu0 %1145
      %1147 = vrot.lane.b32.xlu0 %v1140, 15
      %v1148 = vpop.permute.xlu0 %1147
      %1149 = vrot.lane.b32.xlu0 %v1141, 15
      %v1150 = vpop.permute.xlu0 %1149
      %v1151 = vsel %vm453, %v1146, %v1148
      %v1152 = vsel %vm453, %v1148, %v1150
      %1155 = vst [vmem:[#allocation4 + $0x40] sm:$0xff] %v1151
      %1156 = vst [vmem:[#allocation4 + $0x48] sm:$0xff] %v1152
      %v1157 = vld [vmem:[%s331] sm:$0xff]
      %v1158 = vld [vmem:[%s331 + $0x8] sm:$0xff]
      %v1159 = vld [vmem:[%s331 + $0x10] sm:$0xff]
      %v1160 = vmul.f32 %v1157, %v433
      %v1161 = vmul.f32 %v1158, %v437
      %v1162 = vmul.f32 %v1159, %v435
      %1166 = vrot.lane.b32.xlu0 %v1160, 15
      %v1167 = vpop.permute.xlu0 %1166
      %1168 = vrot.lane.b32.xlu0 %v1161, 15
      %v1169 = vpop.permute.xlu0 %1168
      %1170 = vrot.lane.b32.xlu0 %v1162, 15
      %v1171 = vpop.permute.xlu0 %1170
      %v1172 = vsel %vm453, %v1167, %v1169
      %v1173 = vsel %vm453, %v1169, %v1171
      %1176 = vst [vmem:[#allocation4 + $0x50] sm:$0xff] %v1172
      %1177 = vst [vmem:[#allocation4 + $0x58] sm:$0xff] %v1173
      %v1178 = vld [vmem:[#allocation3] sm:$0xff]
      %v1179 = vld [vmem:[#allocation3 + $0x8] sm:$0xff]
      %v1180 = vld [vmem:[#allocation3 + $0x10] sm:$0xff]
      %v1181 = vmul.f32 %v1178, %v485
      %v1182 = vmul.f32 %v1179, %v489
      %v1183 = vmul.f32 %v1180, %v487
      %1187 = vrot.lane.b32.xlu0 %v1181, 1
      %v1188 = vpop.permute.xlu0 %1187
      %1189 = vrot.lane.b32.xlu0 %v1182, 1
      %v1190 = vpop.permute.xlu0 %1189
      %1191 = vrot.lane.b32.xlu0 %v1183, 1
      %v1192 = vpop.permute.xlu0 %1191
      %v1193 = vsel %vm505, %v1188, %v1190
      %v1194 = vsel %vm505, %v1190, %v1192
      %1197 = vst [vmem:[#allocation4 + $0x60] sm:$0xff] %v1193
      %1198 = vst [vmem:[#allocation4 + $0x68] sm:$0xff] %v1194
      %v1199 = vld [vmem:[%s331] sm:$0xff]
      %v1200 = vld [vmem:[%s331 + $0x8] sm:$0xff]
      %v1201 = vld [vmem:[%s331 + $0x10] sm:$0xff]
      %v1202 = vmul.f32 %v1199, %v485
      %v1203 = vmul.f32 %v1200, %v489
      %v1204 = vmul.f32 %v1201, %v487
      %1208 = vrot.lane.b32.xlu0 %v1202, 1
      %v1209 = vpop.permute.xlu0 %1208
      %1210 = vrot.lane.b32.xlu0 %v1203, 1
      %v1211 = vpop.permute.xlu0 %1210
      %1212 = vrot.lane.b32.xlu0 %v1204, 1
      %v1213 = vpop.permute.xlu0 %1212
      %v1214 = vsel %vm505, %v1209, %v1211
      %v1215 = vsel %vm505, %v1211, %v1213
      %1218 = vst [vmem:[#allocation4 + $0x70] sm:$0xff] %v1214
      %1219 = vst [vmem:[#allocation4 + $0x78] sm:$0xff] %v1215
      %v1220 = vld [vmem:[#allocation3 + $0x8] sm:$0xff]
      %v1221 = vld [vmem:[#allocation3 + $0x10] sm:$0xff]
      %1222 = vst [vmem:[#allocation4 + $0x80] sm:$0xff] %v1220
      %1223 = vst [vmem:[#allocation4 + $0x88] sm:$0xff] %v1221
      %v1224 = vld [vmem:[%s331 + $0x8] sm:$0xff]
      %v1225 = vld [vmem:[%s331 + $0x10] sm:$0xff]
      %1226 = vst [vmem:[#allocation4 + $0x90] sm:$0xff] %v1224
      %1227 = vst [vmem:[#allocation4 + $0x98] sm:$0xff] %v1225
      %v1228 = vld [vmem:[#allocation3 + $0x8] sm:$0xff]
      %v1229 = vld [vmem:[#allocation3 + $0x10] sm:$0xff]
      %v1230 = vld [vmem:[#allocation3 + $0x18] sm:$0xff]
      %v1231 = vmul.f32 %v1228, %v545
      %v1232 = vmul.f32 %v1229, %v548
      %v1233 = vmul.f32 %v1230, %v547
      %1237 = vrot.lane.b32.xlu0 %v1231, 127
      %v1238 = vpop.permute.xlu0 %1237
      %1239 = vrot.lane.b32.xlu0 %v1232, 127
      %v1240 = vpop.permute.xlu0 %1239
      %1241 = vrot.lane.b32.xlu0 %v1233, 127
      %v1242 = vpop.permute.xlu0 %1241
      %v1243 = vsel %vm488, %v1238, %v1240
      %v1244 = vsel %vm488, %v1240, %v1242
      %1247 = vst [vmem:[#allocation4 + $0xa0] sm:$0xff] %v1243
      %1248 = vst [vmem:[#allocation4 + $0xa8] sm:$0xff] %v1244
      %v1249 = vld [vmem:[%s331 + $0x8] sm:$0xff]
      %v1250 = vld [vmem:[%s331 + $0x10] sm:$0xff]
      %v1251 = vld [vmem:[%s331 + $0x18] sm:$0xff]
      %v1252 = vmul.f32 %v1249, %v545
      %v1253 = vmul.f32 %v1250, %v548
      %v1254 = vmul.f32 %v1251, %v547
      %1258 = vrot.lane.b32.xlu0 %v1252, 127
      %v1259 = vpop.permute.xlu0 %1258
      %1260 = vrot.lane.b32.xlu0 %v1253, 127
      %v1261 = vpop.permute.xlu0 %1260
      %1262 = vrot.lane.b32.xlu0 %v1254, 127
      %v1263 = vpop.permute.xlu0 %1262
      %v1264 = vsel %vm488, %v1259, %v1261
      %v1265 = vsel %vm488, %v1261, %v1263
      %1268 = vst [vmem:[#allocation4 + $0xb0] sm:$0xff] %v1264
      %1269 = vst [vmem:[#allocation4 + $0xb8] sm:$0xff] %v1265
      %v1270 = vld [vmem:[#allocation3 + $0x8] sm:$0xff]
      %v1271 = vld [vmem:[#allocation3 + $0x10] sm:$0xff]
      %v1272 = vld [vmem:[#allocation3 + $0x18] sm:$0xff]
      %v1273 = vmul.f32 %v1270, %v595
      %v1274 = vmul.f32 %v1271, %v598
      %v1275 = vmul.f32 %v1272, %v597
      %1279 = vrot.lane.b32.xlu0 %v1273, 113
      %v1280 = vpop.permute.xlu0 %1279
      %1281 = vrot.lane.b32.xlu0 %v1274, 113
      %v1282 = vpop.permute.xlu0 %1281
      %1283 = vrot.lane.b32.xlu0 %v1275, 113
      %v1284 = vpop.permute.xlu0 %1283
      %v1285 = vsel %vm436, %v1280, %v1282
      %v1286 = vsel %vm436, %v1282, %v1284
      %1289 = vst [vmem:[#allocation4 + $0xc0] sm:$0xff] %v1285
      %1290 = vst [vmem:[#allocation4 + $0xc8] sm:$0xff] %v1286
      %v1291 = vld [vmem:[%s331 + $0x8] sm:$0xff]
      %v1292 = vld [vmem:[%s331 + $0x10] sm:$0xff]
      %v1293 = vld [vmem:[%s331 + $0x18] sm:$0xff]
      %v1294 = vmul.f32 %v1291, %v595
      %v1295 = vmul.f32 %v1292, %v598
      %v1296 = vmul.f32 %v1293, %v597
      %1300 = vrot.lane.b32.xlu0 %v1294, 113
      %v1301 = vpop.permute.xlu0 %1300
      %1302 = vrot.lane.b32.xlu0 %v1295, 113
      %v1303 = vpop.permute.xlu0 %1302
      %1304 = vrot.lane.b32.xlu0 %v1296, 113
      %v1305 = vpop.permute.xlu0 %1304
      %v1306 = vsel %vm436, %v1301, %v1303
      %v1307 = vsel %vm436, %v1303, %v1305
      %1310 = vst [vmem:[#allocation4 + $0xd0] sm:$0xff] %v1306
      %1311 = vst [vmem:[#allocation4 + $0xd8] sm:$0xff] %v1307
      %v1312 = vld [vmem:[#allocation3 + $0x8] sm:$0xff]
      %v1313 = vld [vmem:[#allocation3 + $0x10] sm:$0xff]
      %v1314 = vld [vmem:[#allocation3 + $0x18] sm:$0xff]
      %1318 = vrot.lane.b32.xlu0 %v1312, 112
      %v1319 = vpop.permute.xlu0 %1318
      %1320 = vrot.lane.b32.xlu0 %v1313, 112
      %v1321 = vpop.permute.xlu0 %1320
      %1322 = vrot.lane.b32.xlu0 %v1314, 112
      %v1323 = vpop.permute.xlu0 %1322
      %v1324 = vsel %vm653, %v1319, %v1321
      %v1325 = vsel %vm653, %v1321, %v1323
      %1328 = vst [vmem:[#allocation4 + $0xe0] sm:$0xff] %v1324
      %1329 = vst [vmem:[#allocation4 + $0xe8] sm:$0xff] %v1325
      %v1330 = vld [vmem:[%s331 + $0x8] sm:$0xff]
      %v1331 = vld [vmem:[%s331 + $0x10] sm:$0xff]
      %v1332 = vld [vmem:[%s331 + $0x18] sm:$0xff]
      %1336 = vrot.lane.b32.xlu0 %v1330, 112
      %v1337 = vpop.permute.xlu0 %1336
      %1338 = vrot.lane.b32.xlu0 %v1331, 112
      %v1339 = vpop.permute.xlu0 %1338
      %1340 = vrot.lane.b32.xlu0 %v1332, 112
      %v1341 = vpop.permute.xlu0 %1340
      %v1342 = vsel %vm653, %v1337, %v1339
      %v1343 = vsel %vm653, %v1339, %v1341
      %1346 = vst [vmem:[#allocation4 + $0xf0] sm:$0xff] %v1342
      %1347 = vst [vmem:[#allocation4 + $0xf8] sm:$0xff] %v1343
      %v1348 = vld [vmem:[#allocation3 + $0x8] sm:$0xff]
      %v1349 = vld [vmem:[#allocation3 + $0x10] sm:$0xff]
      %v1350 = vld [vmem:[#allocation3 + $0x18] sm:$0xff]
      %v1351 = vmul.f32 %v1348, %v682
      %v1352 = vmul.f32 %v1349, %v685
      %v1353 = vmul.f32 %v1350, %v684
      %1357 = vrot.lane.b32.xlu0 %v1351, 111
      %v1358 = vpop.permute.xlu0 %1357
      %1359 = vrot.lane.b32.xlu0 %v1352, 111
      %v1360 = vpop.permute.xlu0 %1359
      %1361 = vrot.lane.b32.xlu0 %v1353, 111
      %v1362 = vpop.permute.xlu0 %1361
      %v1363 = vsel %vm345, %v1358, %v1360
      %v1364 = vsel %vm345, %v1360, %v1362
      %1367 = vst [vmem:[#allocation4 + $0x100] sm:$0xff] %v1363
      %1368 = vst [vmem:[#allocation4 + $0x108] sm:$0xff] %v1364
      %v1369 = vld [vmem:[%s331 + $0x8] sm:$0xff]
      %v1370 = vld [vmem:[%s331 + $0x10] sm:$0xff]
      %v1371 = vld [vmem:[%s331 + $0x18] sm:$0xff]
      %v1372 = vmul.f32 %v1369, %v682
      %v1373 = vmul.f32 %v1370, %v685
      %v1374 = vmul.f32 %v1371, %v684
      %1378 = vrot.lane.b32.xlu0 %v1372, 111
      %v1379 = vpop.permute.xlu0 %1378
      %1380 = vrot.lane.b32.xlu0 %v1373, 111
      %v1381 = vpop.permute.xlu0 %1380
      %1382 = vrot.lane.b32.xlu0 %v1374, 111
      %v1383 = vpop.permute.xlu0 %1382
      %v1384 = vsel %vm345, %v1379, %v1381
      %v1385 = vsel %vm345, %v1381, %v1383
      %1388 = vst [vmem:[#allocation4 + $0x110] sm:$0xff] %v1384
      %1389 = vst [vmem:[#allocation4 + $0x118] sm:$0xff] %v1385
      %v1390 = vld [vmem:[#allocation4] sm:$0xff]
      %v1391 = vld [vmem:[#allocation4 + $0x8] sm:$0xff]
      %v1392 = vld [vmem:[#allocation4 + $0x10] sm:$0xff]
      %v1393 = vld [vmem:[#allocation4 + $0x18] sm:$0xff]
      %v1394 = vld [vmem:[#allocation4 + $0x20] sm:$0xff]
      %v1395 = vld [vmem:[#allocation4 + $0x28] sm:$0xff]
      %v1396 = vld [vmem:[#allocation4 + $0x30] sm:$0xff]
      %v1397 = vld [vmem:[#allocation4 + $0x38] sm:$0xff]
      %v1398 = vld [vmem:[#allocation4 + $0x40] sm:$0xff]
      %v1399 = vld [vmem:[#allocation4 + $0x48] sm:$0xff]
      %v1400 = vld [vmem:[#allocation4 + $0x50] sm:$0xff]
      %v1401 = vld [vmem:[#allocation4 + $0x58] sm:$0xff]
      %v1402 = vld [vmem:[#allocation4 + $0x60] sm:$0xff]
      %v1403 = vld [vmem:[#allocation4 + $0x68] sm:$0xff]
      %v1404 = vld [vmem:[#allocation4 + $0x70] sm:$0xff]
      %v1405 = vld [vmem:[#allocation4 + $0x78] sm:$0xff]
      %v1406 = vld [vmem:[#allocation4 + $0x80] sm:$0xff]
      %v1407 = vld [vmem:[#allocation4 + $0x88] sm:$0xff]
      %v1408 = vld [vmem:[#allocation4 + $0x90] sm:$0xff]
      %v1409 = vld [vmem:[#allocation4 + $0x98] sm:$0xff]
      %v1410 = vld [vmem:[#allocation4 + $0xa0] sm:$0xff]
      %v1411 = vld [vmem:[#allocation4 + $0xa8] sm:$0xff]
      %v1412 = vld [vmem:[#allocation4 + $0xb0] sm:$0xff]
      %v1413 = vld [vmem:[#allocation4 + $0xb8] sm:$0xff]
      %v1414 = vld [vmem:[#allocation4 + $0xc0] sm:$0xff]
      %v1415 = vld [vmem:[#allocation4 + $0xc8] sm:$0xff]
      %v1416 = vld [vmem:[#allocation4 + $0xd0] sm:$0xff]
      %v1417 = vld [vmem:[#allocation4 + $0xd8] sm:$0xff]
      %v1418 = vld [vmem:[#allocation4 + $0xe0] sm:$0xff]
      %v1419 = vld [vmem:[#allocation4 + $0xe8] sm:$0xff]
      %v1420 = vld [vmem:[#allocation4 + $0xf0] sm:$0xff]
      %v1421 = vld [vmem:[#allocation4 + $0xf8] sm:$0xff]
      %v1422 = vld [vmem:[#allocation4 + $0x100] sm:$0xff]
      %v1423 = vld [vmem:[#allocation4 + $0x108] sm:$0xff]
      %v1424 = vld [vmem:[#allocation4 + $0x110] sm:$0xff]
      %v1425 = vld [vmem:[#allocation4 + $0x118] sm:$0xff]
      %v1427 = vsel %vm764, %v1056, 0
      %1429 = vmatprep.subr.mxu0 %v1391
      %1430 = vmatpush1.msra.mxu0 %v1390
      %1431 = vmatprep.subr.mxu0 %v1395
      %1432 = vmatpush1.msra.mxu0 %v1394
      %1433 = vmatprep.subr.mxu0 %v1399
      %1434 = vmatpush1.msra.mxu0 %v1398
      %1435 = vmatprep.subr.mxu0 %v1403
      %1436 = vmatpush1.msra.mxu0 %v1402
      %1437 = vmatprep.subr.mxu0 %v1407
      %1438 = vmatpush1.msra.mxu0 %v1406
      %1439 = vmatprep.subr.mxu0 %v1411
      %1440 = vmatpush1.msra.mxu0 %v1410
      %1441 = vmatprep.subr.mxu0 %v1415
      %1442 = vmatpush1.msra.mxu0 %v1414
      %1443 = vmatprep.subr.mxu0 %v1419
      %1444 = vmatpush1.msra.mxu0 %v1418
      %1445 = vmatprep.subr.mxu0 %v1423
      %1446 = vmatpush1.msra.mxu0 %v1422
      %1447 = vmatprep.subr.mxu0 0.0
      %1448 = vmatpush1.msra.mxu0 0.0
      %1449 = vmatprep.subr.mxu0 0.0
      %1450 = vmatpush1.msra.mxu0 0.0
      %1451 = vmatprep.subr.mxu0 0.0
      %1452 = vmatpush1.msra.mxu0 0.0
      %1453 = vmatprep.subr.mxu0 0.0
      %1454 = vmatpush1.msra.mxu0 0.0
      %1455 = vmatprep.subr.mxu0 0.0
      %1456 = vmatpush1.msra.mxu0 0.0
      %1457 = vmatprep.subr.mxu0 0.0
      %1458 = vmatpush1.msra.mxu0 0.0
      %1459 = vmatprep.subr.mxu0 0.0
      %1460 = vmatpush1.msra.mxu0 0.0
      %1461 = vmatprep.subr.mxu0 0.0
      %1462 = vmatpush1.msra.mxu0 0.0
      %1463 = vmatprep.subr.mxu0 0.0
      %1464 = vmatpush1.msra.mxu0 0.0
      %1465 = vmatprep.subr.mxu0 0.0
      %1466 = vmatpush1.msra.mxu0 0.0
      %1467 = vmatprep.subr.mxu0 0.0
      %1468 = vmatpush1.msra.mxu0 0.0
      %1469 = vmatprep.subr.mxu0 0.0
      %1470 = vmatpush1.msra.mxu0 0.0
      %1471 = vmatprep.subr.mxu0 0.0
      %1472 = vmatpush1.msra.mxu0 0.0
      %1473 = vmatprep.subr.mxu0 0.0
      %1474 = vmatpush1.msra.mxu0 0.0
      %1475 = vmatprep.subr.mxu0 0.0
      %1476 = vmatpush1.msra.mxu0 0.0
      %1477 = vmatprep.subr.mxu0 0.0
      %1478 = vmatpush1.msra.mxu0 0.0
      %1479 = vmatprep.subr.mxu0 0.0
      %1480 = vmatpush1.msra.mxu0 0.0
      %1481 = vmatprep.subr.mxu0 0.0
      %1482 = vmatpush1.msra.mxu0 0.0
      %1483 = vmatprep.subr.mxu0 0.0
      %1484 = vmatpush1.msra.mxu0 0.0
      %1485 = vmatprep.subr.mxu0 0.0
      %1486 = vmatpush1.msra.mxu0 0.0
      %1487 = vmatprep.subr.mxu0 0.0
      %1488 = vmatpush1.msra.mxu0 0.0
      %1489 = vmatprep.subr.mxu0 0.0
      %1490 = vmatpush1.msra.mxu0 0.0
      %1491 = vmatprep.subr.mxu0 0.0
      %1492 = vmatpush1.msra.mxu0 0.0
      %1493 = vmatprep.mubr.f32.mxu0 0.0
      %1494 = vmatmul.mubr.f32.gmra.mrb[0].mxu0 %v1427
      %v1495 = vpop.f32.mrb[0].mxu0
      %v1496 = vadd.f32 0.0, %v1495
      %v1497 = vpop.f32.mrb[0].mxu0
      %v1498 = vadd.f32 0.0, %v1497
      %1499 = vdwg.mxu0
      %1500 = vmatprep.subr.mxu0 %v1393
      %1501 = vmatpush1.msra.mxu0 %v1392
      %1502 = vmatprep.subr.mxu0 %v1397
      %1503 = vmatpush1.msra.mxu0 %v1396
      %1504 = vmatprep.subr.mxu0 %v1401
      %1505 = vmatpush1.msra.mxu0 %v1400
      %1506 = vmatprep.subr.mxu0 %v1405
      %1507 = vmatpush1.msra.mxu0 %v1404
      %1508 = vmatprep.subr.mxu0 %v1409
      %1509 = vmatpush1.msra.mxu0 %v1408
      %1510 = vmatprep.subr.mxu0 %v1413
      %1511 = vmatpush1.msra.mxu0 %v1412
      %1512 = vmatprep.subr.mxu0 %v1417
      %1513 = vmatpush1.msra.mxu0 %v1416
      %1514 = vmatprep.subr.mxu0 %v1421
      %1515 = vmatpush1.msra.mxu0 %v1420
      %1516 = vmatprep.subr.mxu0 %v1425
      %1517 = vmatpush1.msra.mxu0 %v1424
      %1518 = vmatprep.subr.mxu0 0.0
      %1519 = vmatpush1.msra.mxu0 0.0
      %1520 = vmatprep.subr.mxu0 0.0
      %1521 = vmatpush1.msra.mxu0 0.0
      %1522 = vmatprep.subr.mxu0 0.0
      %1523 = vmatpush1.msra.mxu0 0.0
      %1524 = vmatprep.subr.mxu0 0.0
      %1525 = vmatpush1.msra.mxu0 0.0
      %1526 = vmatprep.subr.mxu0 0.0
      %1527 = vmatpush1.msra.mxu0 0.0
      %1528 = vmatprep.subr.mxu0 0.0
      %1529 = vmatpush1.msra.mxu0 0.0
      %1530 = vmatprep.subr.mxu0 0.0
      %1531 = vmatpush1.msra.mxu0 0.0
      %1532 = vmatprep.subr.mxu0 0.0
      %1533 = vmatpush1.msra.mxu0 0.0
      %1534 = vmatprep.subr.mxu0 0.0
      %1535 = vmatpush1.msra.mxu0 0.0
      %1536 = vmatprep.subr.mxu0 0.0
      %1537 = vmatpush1.msra.mxu0 0.0
      %1538 = vmatprep.subr.mxu0 0.0
      %1539 = vmatpush1.msra.mxu0 0.0
      %1540 = vmatprep.subr.mxu0 0.0
      %1541 = vmatpush1.msra.mxu0 0.0
      %1542 = vmatprep.subr.mxu0 0.0
      %1543 = vmatpush1.msra.mxu0 0.0
      %1544 = vmatprep.subr.mxu0 0.0
      %1545 = vmatpush1.msra.mxu0 0.0
      %1546 = vmatprep.subr.mxu0 0.0
      %1547 = vmatpush1.msra.mxu0 0.0
      %1548 = vmatprep.subr.mxu0 0.0
      %1549 = vmatpush1.msra.mxu0 0.0
      %1550 = vmatprep.subr.mxu0 0.0
      %1551 = vmatpush1.msra.mxu0 0.0
      %1552 = vmatprep.subr.mxu0 0.0
      %1553 = vmatpush1.msra.mxu0 0.0
      %1554 = vmatprep.subr.mxu0 0.0
      %1555 = vmatpush1.msra.mxu0 0.0
      %1556 = vmatprep.subr.mxu0 0.0
      %1557 = vmatpush1.msra.mxu0 0.0
      %1558 = vmatprep.subr.mxu0 0.0
      %1559 = vmatpush1.msra.mxu0 0.0
      %1560 = vmatprep.subr.mxu0 0.0
      %1561 = vmatpush1.msra.mxu0 0.0
      %1562 = vmatprep.subr.mxu0 0.0
      %1563 = vmatpush1.msra.mxu0 0.0
      %1564 = vmatprep.mubr.f32.mxu0 0.0
      %1565 = vmatmul.mubr.f32.gmra.mrb[0].mxu0 %v1427
      %v1566 = vpop.f32.mrb[0].mxu0
      %v1567 = vadd.f32 0.0, %v1566
      %v1568 = vpop.f32.mrb[0].mxu0
      %v1569 = vadd.f32 0.0, %v1568
      %1570 = vdwg.mxu0
      %v1571 = vmul.f32 %v1390, %v1390
      %v1572 = vmul.f32 %v1391, %v1391
      %v1573 = vmul.f32 %v1392, %v1392
      %v1574 = vmul.f32 %v1393, %v1393
      %v1575 = vmul.f32 %v1394, %v1394
      %v1576 = vmul.f32 %v1395, %v1395
      %v1577 = vmul.f32 %v1396, %v1396
      %v1578 = vmul.f32 %v1397, %v1397
      %v1579 = vmul.f32 %v1398, %v1398
      %v1580 = vmul.f32 %v1399, %v1399
      %v1581 = vmul.f32 %v1400, %v1400
      %v1582 = vmul.f32 %v1401, %v1401
      %v1583 = vmul.f32 %v1402, %v1402
      %v1584 = vmul.f32 %v1403, %v1403
      %v1585 = vmul.f32 %v1404, %v1404
      %v1586 = vmul.f32 %v1405, %v1405
      %v1587 = vmul.f32 %v1406, %v1406
      %v1588 = vmul.f32 %v1407, %v1407
      %v1589 = vmul.f32 %v1408, %v1408
      %v1590 = vmul.f32 %v1409, %v1409
      %v1591 = vmul.f32 %v1410, %v1410
      %v1592 = vmul.f32 %v1411, %v1411
      %v1593 = vmul.f32 %v1412, %v1412
      %v1594 = vmul.f32 %v1413, %v1413
      %v1595 = vmul.f32 %v1414, %v1414
      %v1596 = vmul.f32 %v1415, %v1415
      %v1597 = vmul.f32 %v1416, %v1416
      %v1598 = vmul.f32 %v1417, %v1417
      %v1599 = vmul.f32 %v1418, %v1418
      %v1600 = vmul.f32 %v1419, %v1419
      %v1601 = vmul.f32 %v1420, %v1420
      %v1602 = vmul.f32 %v1421, %v1421
      %v1603 = vmul.f32 %v1422, %v1422
      %v1604 = vmul.f32 %v1423, %v1423
      %v1605 = vmul.f32 %v1424, %v1424
      %v1606 = vmul.f32 %v1425, %v1425
      %v1607 = vadd.f32 %v1571, %v1575
      %v1608 = vadd.f32 %v1607, %v1579
      %v1609 = vadd.f32 %v1608, %v1583
      %v1610 = vadd.f32 %v1609, %v1587
      %v1611 = vadd.f32 %v1610, %v1591
      %v1612 = vadd.f32 %v1611, %v1595
      %v1613 = vadd.f32 %v1612, %v1599
      %v1614 = vadd.f32 %v1613, %v1603
      %v1615 = vrot.slane %v1614, 4
      %v1616 = vadd.f32 %v1614, %v1615
      %v1617 = vrot.slane %v1616, 2
      %v1618 = vadd.f32 %v1616, %v1617
      %v1619 = vrot.slane %v1618, 1
      %v1620 = vadd.f32 %v1618, %v1619
      %v1621 = vadd.f32 %v1572, %v1576
      %v1622 = vadd.f32 %v1621, %v1580
      %v1623 = vadd.f32 %v1622, %v1584
      %v1624 = vadd.f32 %v1623, %v1588
      %v1625 = vadd.f32 %v1624, %v1592
      %v1626 = vadd.f32 %v1625, %v1596
      %v1627 = vadd.f32 %v1626, %v1600
      %v1628 = vadd.f32 %v1627, %v1604
      %v1629 = vrot.slane %v1628, 4
      %v1630 = vadd.f32 %v1628, %v1629
      %v1631 = vrot.slane %v1630, 2
      %v1632 = vadd.f32 %v1630, %v1631
      %v1633 = vrot.slane %v1632, 1
      %v1634 = vadd.f32 %v1632, %v1633
      %v1635 = vadd.f32 %v1573, %v1577
      %v1636 = vadd.f32 %v1635, %v1581
      %v1637 = vadd.f32 %v1636, %v1585
      %v1638 = vadd.f32 %v1637, %v1589
      %v1639 = vadd.f32 %v1638, %v1593
      %v1640 = vadd.f32 %v1639, %v1597
      %v1641 = vadd.f32 %v1640, %v1601
      %v1642 = vadd.f32 %v1641, %v1605
      %v1643 = vrot.slane %v1642, 4
      %v1644 = vadd.f32 %v1642, %v1643
      %v1645 = vrot.slane %v1644, 2
      %v1646 = vadd.f32 %v1644, %v1645
      %v1647 = vrot.slane %v1646, 1
      %v1648 = vadd.f32 %v1646, %v1647
      %v1649 = vadd.f32 %v1574, %v1578
      %v1650 = vadd.f32 %v1649, %v1582
      %v1651 = vadd.f32 %v1650, %v1586
      %v1652 = vadd.f32 %v1651, %v1590
      %v1653 = vadd.f32 %v1652, %v1594
      %v1654 = vadd.f32 %v1653, %v1598
      %v1655 = vadd.f32 %v1654, %v1602
      %v1656 = vadd.f32 %v1655, %v1606
      %v1657 = vrot.slane %v1656, 4
      %v1658 = vadd.f32 %v1656, %v1657
      %v1659 = vrot.slane %v1658, 2
      %v1660 = vadd.f32 %v1658, %v1659
      %v1661 = vrot.slane %v1660, 1
      %v1662 = vadd.f32 %v1660, %v1661
      %v1663 = vadd.f32 %v1620, 1e-06
      %v1664 = vadd.f32 %v1634, 1e-06
      %v1665 = vadd.f32 %v1648, 1e-06
      %v1666 = vadd.f32 %v1662, 1e-06
      %v1667 = vrsqrt.pop %v1663
      %v1668 = vrsqrt.pop %v1664
      %v1669 = vrsqrt.pop %v1665
      %v1670 = vrsqrt.pop %v1666
      %v1671 = vand.u32 2147483647, %v1496
      %v1672 = vand.u32 2147483647, %v1498
      %v1673 = vand.u32 2147483647, %v1567
      %v1674 = vand.u32 2147483647, %v1569
      %v1675 = vmul.f32 %v1671, %v1667
      %v1676 = vmul.f32 %v1672, %v1668
      %v1677 = vmul.f32 %v1673, %v1669
      %v1678 = vmul.f32 %v1674, %v1670
      %v1679 = vmul.f32 %v1675, %v1496
      %v1680 = vmul.f32 %v1676, %v1498
      %v1681 = vmul.f32 %v1677, %v1567
      %v1682 = vmul.f32 %v1678, %v1569
      %v1683 = vadd.f32 %v1679, %v1680
      %v1684 = vadd.f32 %v1683, %v1681
      %v1685 = vadd.f32 %v1684, %v1682
      %1686 = vadd.xlane.f32.xlu0 %v1685
      %v1687 = vpop.xlane.xlu0 %1686
      %v1688 = vmul.f32 %v1687, 0.001953125
      %v1689 = vmul.f32 %v1679, %v1679
      %v1690 = vmul.f32 %v1680, %v1680
      %v1691 = vmul.f32 %v1681, %v1681
      %v1692 = vmul.f32 %v1682, %v1682
      %v1693 = vadd.f32 %v1689, %v1690
      %v1694 = vadd.f32 %v1693, %v1691
      %v1695 = vadd.f32 %v1694, %v1692
      %1696 = vadd.xlane.f32.xlu0 %v1695
      %v1697 = vpop.xlane.xlu0 %1696
      %v1698 = vmul.f32 %v1697, 0.001953125
      %v1699 = vmul.f32 %v1688, %v1688
      %v1700 = vsub.f32 %v1698, %v1699
      %v1701 = vadd.f32 %v1700, 1e-05
      %v1702 = vrsqrt.pop %v1701
      %v1703 = vmul.f32 %v1702, %v1057
      %1705 = vset.pattern.permute.xlu0 0
      %1706 = vperm.xlu0 %1705, %v1703
      %v1707 = vpop.permute.xlu0 %1706
      %v1709 = vmul.f32 %v1679, %v1707
      %v1710 = vmul.f32 %v1680, %v1707
      %v1711 = vmul.f32 %v1681, %v1707
      %v1712 = vmul.f32 %v1682, %v1707
      %v1713 = vld [vmem:[#allocation2] sm:$0xff]
      %v1714 = vld [vmem:[#allocation2 + $0x8] sm:$0xff]
      %v1715 = vadd.f32 %v1709, %v1713
      %v1716 = vadd.f32 %v1710, %v1714
      %1717 = vst [vmem:[%s272] sm:$0xff] %v1715
      %1718 = vst [vmem:[%s272 + $0x8] sm:$0xff] %v1716
      %1719 = vst [vmem:[#allocation2] sm:$0xff] %v1715
      %1720 = vst [vmem:[#allocation2 + $0x8] sm:$0xff] %v1716
      %v1721 = vld [vmem:[%s328] sm:$0xff]
      %v1722 = vld [vmem:[%s328 + $0x8] sm:$0xff]
      %v1723 = vadd.f32 %v1711, %v1721
      %v1724 = vadd.f32 %v1712, %v1722
      %s1725 = scalar_lea.vmem %s272, 16
      %1726 = vst [vmem:[%s1725] sm:$0xff] %v1723
      %1727 = vst [vmem:[%s1725 + $0x8] sm:$0xff] %v1724
      %1728 = vst [vmem:[%s328] sm:$0xff] %v1723
      %1729 = vst [vmem:[%s328 + $0x8] sm:$0xff] %v1724
      %p1730 = scmp.lt.s32.totalorder %s16, 1
      %s1731 = scalar_select %p1730, %s16, 1
      %s1732 = smul.addr %s1731, 4
      %s1733 = smul.addr %s1732, 8
      %s1734 = scalar_lea.vmem %s5, %s1733
      // Predicated region
      $region45: #{layer_forward.1} parent=39 // pred_check
        %p1735 = pneg %p159
      $region46: #{layer_forward.1} parent=39 // pred_check_branch
        %1737 = sbr.rel (%p1735) target = $region48
      $region47: #{layer_forward.1} parent=39 // pred_region
        _
      $region48: #{layer_forward.1} parent=39 // pred_fallthru
        _
    $region40: #{layer_forward.1} parent=5 // pred_fallthru
      _
    %p1738 = scmp.le.s32.totalorder 2, %s11
    // Predicated region
    $region49: #{layer_forward.1} parent=5 // pred_check
      %p1739 = pneg %p1738
    $region50: #{layer_forward.1} parent=5 // pred_check_branch
      %1741 = sbr.rel (%p1739) target = $region52
    $region51: #{layer_forward.1} parent=5 // pred_region
      %s1742 = ssub.s32 %s11, 2
      // Predicated region
      $region53: #{layer_forward.1} parent=51 // pred_check
        %p1743 = pneg %p165
      $region54: #{layer_forward.1} parent=51 // pred_check_branch
        %1745 = sbr.rel (%p1743) target = $region56
      $region55: #{layer_forward.1} parent=51 // pred_region
        %p1746 = scmp.lt.s32.totalorder %s17, 1
        %s1747 = scalar_select %p1746, %s17, 1
        %s1748 = smul.addr %s1747, 4
        %s1749 = smul.addr %s1748, 8
        %s1750 = scalar_lea.vmem %s5, %s1749
      $region56: #{layer_forward.1} parent=51 // pred_fallthru
        _
    $region52: #{layer_forward.1} parent=5 // pred_fallthru
      _
  $region6: #{layer_forward.1} parent=0 // loop_footer
    %s15 = sadd.s32 1, %s11
  $region7: #{layer_forward.1} parent=0 // loop_footer_branch
    %10 = sbr.rel target = $region3
  $region8: #{layer_forward.1} parent=0 // loop_exit
    _

</llo_original>
